<compile_context>
chip_gen: v7x
topology: tpu7x:2x2x1
jax: 0.10.0
libtpu: 0.0.40
codegen_flags: <defaults>
</compile_context>

<pallas_src>
import functools
import math

import jax
import jax.numpy as jnp
from jax import lax
from jax.experimental import pallas as pl
from jax.experimental.pallas import tpu as pltpu


def _attention_pooler_kernel(seed_ref, x_ref, w_in_ref, b_in_ref,
                             w_out_ref, b_out_ref, o_ref, *,
                             num_heads, dropout_prob, training):
    H = num_heads
    _, D, E = w_out_ref.shape
    S = x_ref.shape[0]
    cdt = x_ref.dtype                      # MXU input dtype (f32 or bf16)
    dn_t = (((1,), (1,)), ((), ()))        # contract dim 1 of both operands

    x = x_ref[...]                         # (S, E), resident for all heads

    use_dropout = training and 0.0 < dropout_prob < 1.0
    if use_dropout:
        # TODO(synk): dropout mask differs from torch's RNG stream (same
        # semantics in expectation).
        pltpu.prng_seed(seed_ref[0])
        thresh = jnp.uint32(min(int(dropout_prob * 4294967296.0), 4294967295))

    acc = jnp.zeros((S, E), jnp.float32)   # register accumulator over heads

    for h in range(H):                     # statically unrolled head loop
        # Per-head in-projection rows (torch (out, in) layout, no transpose).
        # Wq rows were pre-scaled by 1/sqrt(D) at prepare_params time.
        wq = w_in_ref[pl.ds(h * D, D), :]            # (D, E)
        wk = w_in_ref[pl.ds((H + h) * D, D), :]      # (D, E)
        wv = w_in_ref[pl.ds((2 * H + h) * D, D), :]  # (D, E)
        bq = b_in_ref[pl.ds(h, 1), :]                # (1, D) (pre-scaled)
        bk = b_in_ref[pl.ds(H + h, 1), :]            # (1, D)
        bv = b_in_ref[pl.ds(2 * H + h, 1), :]        # (1, D)

        q = lax.dot_general(x, wq, dn_t, preferred_element_type=jnp.float32) + bq
        k = lax.dot_general(x, wk, dn_t, preferred_element_type=jnp.float32) + bk
        v = lax.dot_general(x, wv, dn_t, preferred_element_type=jnp.float32) + bv

        # Scaled dot-product attention scores, (S, S), f32 accumulation.
        s = lax.dot_general(q.astype(cdt), k.astype(cdt), dn_t,
                            preferred_element_type=jnp.float32)

        # Row softmax: exp on the EUP + approx reciprocal for the denominator.
        m = jnp.max(s, axis=-1, keepdims=True)
        p = jnp.exp(s - m)
        p = p * pl.reciprocal(jnp.sum(p, axis=-1, keepdims=True), approx=True)

        if training and dropout_prob >= 1.0:
            p = jnp.zeros_like(p)
        elif use_dropout:
            bits = pltpu.bitcast(pltpu.prng_random_bits(p.shape), jnp.uint32)
            p = jnp.where(bits >= thresh,
                          p * (1.0 / (1.0 - dropout_prob)), 0.0)

        attn = jnp.dot(p.astype(cdt), v.astype(cdt),
                       preferred_element_type=jnp.float32)          # (S, D)

        # This head's slice of the output projection, accumulated over heads.
        acc = acc + jnp.dot(attn.astype(cdt), w_out_ref[h],
                            preferred_element_type=jnp.float32)     # (S, E)

    out = acc + b_out_ref[...]                                      # (S, E)
    # max_pool over the sequence axis -> lane-dense (1, E) store.
    o_ref[...] = jnp.max(out, axis=0, keepdims=True).astype(o_ref.dtype)


def prepare_params(w_in, b_in, w_out, b_out, num_heads,
                   compute_dtype=jnp.float32):
    """One-time repack of torch-layout MultiheadAttention parameters.

    w_in : (3E, E) in_proj_weight (row blocks: q heads, k heads, v heads)
    b_in : (3E,)   in_proj_bias
    w_out: (E, E)  out_proj.weight
    b_out: (E,)    out_proj.bias
    """
    _, E = w_in.shape
    H = num_heads
    D = E // H
    # Fold the 1/sqrt(D) attention scale into the q projection (rows 0:E).
    row_scale = jnp.concatenate([jnp.full((E,), 1.0 / math.sqrt(D), jnp.float32),
                                 jnp.ones((2 * E,), jnp.float32)])
    w_in_s = w_in * row_scale[:, None]
    b_in_s = b_in * row_scale
    return {
        # torch (out, in) layout kept as-is; per-head (D, E) row blocks are
        # sliced inside the kernel (q rows h*D, k rows (H+h)*D, v rows (2H+h)*D).
        "w_in": w_in_s.astype(compute_dtype),
        # (3H, D): one D-wide bias row per (role, head).
        "b_in": b_in_s.reshape(3 * H, D).astype(jnp.float32),
        # (H, D, E): w_out_heads[h, d, :] = w_out[:, h*D + d] — repacked once so
        # every per-head out-proj block is lane-dense along E.
        "w_out": jnp.transpose(w_out.reshape(E, H, D),
                               (1, 2, 0)).astype(compute_dtype),
        "b_out": b_out.reshape(1, E).astype(jnp.float32),
    }


def attention_pooler_forward(x, params, seed, *, num_heads,
                             dropout_prob=0.2, training=False):
    """x: (S, E) -> (E,)  (SelfAttention with batch=1, then max-pool over S)."""
    S, E = x.shape
    H = num_heads
    D = E // H
    w_in, b_in = params["w_in"], params["b_in"]
    w_out, b_out = params["w_out"], params["b_out"]
    x_c = x.astype(w_in.dtype)

    itemsize = jnp.dtype(w_in.dtype).itemsize
    cost = pl.CostEstimate(
        flops=2 * S * E * 3 * E + 4 * S * S * E + 2 * S * E * E,
        transcendentals=H * S * S,
        bytes_accessed=(w_in.size + w_out.size + x_c.size) * itemsize
                       + (b_in.size + b_out.size + E) * 4,
    )

    kernel = functools.partial(_attention_pooler_kernel, num_heads=H,
                               dropout_prob=dropout_prob, training=training)

    out = pl.pallas_call(
        kernel,
        out_shape=jax.ShapeDtypeStruct((1, E), jnp.float32),
        grid=(1,),
        in_specs=[
            pl.BlockSpec(memory_space=pltpu.MemorySpace.SMEM),   # seed (1,)
            pl.BlockSpec((S, E), lambda i: (0, 0)),              # x
            pl.BlockSpec((3 * E, E), lambda i: (0, 0)),          # W_in (q|k|v rows)
            pl.BlockSpec((3 * H, D), lambda i: (0, 0)),          # b_in per (role, head)
            pl.BlockSpec((H, D, E), lambda i: (0, 0, 0)),        # W_out per head
            pl.BlockSpec((1, E), lambda i: (0, 0)),              # b_out
        ],
        out_specs=pl.BlockSpec((1, E), lambda i: (0, 0)),
        compiler_params=pltpu.CompilerParams(
            # Single step; everything fits in VMEM so there is nothing to
            # pipeline.  TODO(synk): for large S, re-introduce a sequence-tiled
            # "parallel" grid axis (flash-style) to bound the (S, S) scores.
            dimension_semantics=("arbitrary",),
        ),
        cost_estimate=cost,
    )(seed, x_c, w_in, b_in, w_out, b_out)
    return out[0]


def reference_attention_pooler(x, w_in, b_in, w_out, b_out, num_heads):
    """Pure-JAX f32 reference matching torch MultiheadAttention + max_pool."""
    S, E = x.shape
    H = num_heads
    D = E // H
    qkv = x @ w_in.T + b_in
    q, k, v = jnp.split(qkv, 3, axis=-1)

    def heads(t):
        return t.reshape(S, H, D).transpose(1, 0, 2)     # (H, S, D)

    q, k, v = heads(q), heads(k), heads(v)
    s = jnp.einsum("hqd,hkd->hqk", q, k) / math.sqrt(D)
    p = jax.nn.softmax(s, axis=-1)
    attn = jnp.einsum("hqk,hkd->hqd", p, v)
    attn = attn.transpose(1, 0, 2).reshape(S, E)
    out = attn @ w_out.T + b_out
    return out.max(axis=0)


def _init_params(key, embed_dim):
    E = embed_dim
    kw_in, kb_in, kw_out, kb_out = jax.random.split(key, 4)
    lim_in = math.sqrt(6.0 / (E + E))           # xavier_uniform-like
    w_in = jax.random.uniform(kw_in, (3 * E, E), jnp.float32, -lim_in, lim_in)
    b_in = jax.random.uniform(kb_in, (3 * E,), jnp.float32, -0.05, 0.05)
    lim_out = 1.0 / math.sqrt(E)
    w_out = jax.random.uniform(kw_out, (E, E), jnp.float32, -lim_out, lim_out)
    b_out = jax.random.uniform(kb_out, (E,), jnp.float32, -lim_out, lim_out)
    return w_in, b_in, w_out, b_out


if __name__ == "__main__":
    key = jax.random.PRNGKey(0)
    kx, kp = jax.random.split(key)

    seq_len, embed_dim, num_heads = 16, 128, 4
    x = jax.random.normal(kx, (seq_len, embed_dim), jnp.float32)
    w_in, b_in, w_out, b_out = _init_params(kp, embed_dim)
    seed = jnp.array([0], dtype=jnp.int32)

    ref = reference_attention_pooler(x, w_in, b_in, w_out, b_out, num_heads)

    # f32 compute path (eval mode: attention dropout is identity, as in torch).
    params_f32 = prepare_params(w_in, b_in, w_out, b_out, num_heads,
                                compute_dtype=jnp.float32)
    out_f32 = attention_pooler_forward(x, params_f32, seed,
                                       num_heads=num_heads,
                                       dropout_prob=0.2, training=False)
    out_f32 = jax.block_until_ready(out_f32)
    assert out_f32.shape == (embed_dim,)
    assert jnp.allclose(out_f32, ref, atol=1e-2, rtol=1e-2)

    # bf16 MXU path (weights stored bf16 once, f32 accumulation) — looser check.
    params_bf16 = prepare_params(w_in, b_in, w_out, b_out, num_heads,
                                 compute_dtype=jnp.bfloat16)
    out_bf16 = attention_pooler_forward(x, params_bf16, seed,
                                        num_heads=num_heads,
                                        dropout_prob=0.2, training=False)
    out_bf16 = jax.block_until_ready(out_bf16)
    assert out_bf16.shape == (embed_dim,)
    assert jnp.allclose(out_bf16, ref, atol=1e-1, rtol=1e-1)

    print("KERNEL_OK")
</pallas_src>

<mosaic_0001>
module attributes {stable_mosaic.version = 11 : i64} {
  func.func @_attention_pooler_kernel(%arg0: i32, %arg1: memref<1xi32, #tpu.memory_space<smem>>, %arg2: memref<16x128xf32, #tpu.memory_space<vmem>>, %arg3: memref<384x128xf32, #tpu.memory_space<vmem>>, %arg4: memref<12x32xf32, #tpu.memory_space<vmem>>, %arg5: memref<4x32x128xf32, #tpu.memory_space<vmem>>, %arg6: memref<1x128xf32, #tpu.memory_space<vmem>>, %arg7: memref<1x128xf32, #tpu.memory_space<vmem>>) attributes {dimension_semantics = [#tpu.dimension_semantics<arbitrary>], iteration_bounds = array<i64: 1>, scalar_prefetch = 0 : i64, scratch_operands = 0 : i64, tpu.core_type = #tpu.core_type<tc>, window_params = [{transform_indices = @transform_0, window_bounds = array<i64: 1>}, {pipeline_mode = #tpu.pipeline_mode<synchronous>, transform_indices = @transform_1, window_bounds = array<i64: 16, 128>}, {pipeline_mode = #tpu.pipeline_mode<synchronous>, transform_indices = @transform_2, window_bounds = array<i64: 384, 128>}, {pipeline_mode = #tpu.pipeline_mode<synchronous>, transform_indices = @transform_3, window_bounds = array<i64: 12, 32>}, {pipeline_mode = #tpu.pipeline_mode<synchronous>, transform_indices = @transform_4, window_bounds = array<i64: 4, 32, 128>}, {pipeline_mode = #tpu.pipeline_mode<synchronous>, transform_indices = @transform_5, window_bounds = array<i64: 1, 128>}, {pipeline_mode = #tpu.pipeline_mode<synchronous>, transform_indices = @transform_6, window_bounds = array<i64: 1, 128>}]} {
    %c0 = arith.constant 0 : index
    %c0_0 = arith.constant 0 : index
    %0 = vector.load %arg2[%c0, %c0_0] : memref<16x128xf32, #tpu.memory_space<vmem>>, vector<16x128xf32>
    %cst = arith.constant 0.000000e+00 : f32
    %1 = vector.broadcast %cst : f32 to vector<16x128xf32>
    %c0_1 = arith.constant 0 : index
    %c0_2 = arith.constant 0 : index
    %2 = vector.load %arg3[%c0_1, %c0_2] : memref<384x128xf32, #tpu.memory_space<vmem>>, vector<32x128xf32>
    %c128 = arith.constant 128 : index
    %c0_3 = arith.constant 0 : index
    %3 = vector.load %arg3[%c128, %c0_3] : memref<384x128xf32, #tpu.memory_space<vmem>>, vector<32x128xf32>
    %c256 = arith.constant 256 : index
    %c0_4 = arith.constant 0 : index
    %4 = vector.load %arg3[%c256, %c0_4] : memref<384x128xf32, #tpu.memory_space<vmem>>, vector<32x128xf32>
    %c0_5 = arith.constant 0 : index
    %c0_6 = arith.constant 0 : index
    %5 = vector.load %arg4[%c0_5, %c0_6] : memref<12x32xf32, #tpu.memory_space<vmem>>, vector<1x32xf32>
    %c4 = arith.constant 4 : index
    %c0_7 = arith.constant 0 : index
    %6 = vector.load %arg4[%c4, %c0_7] : memref<12x32xf32, #tpu.memory_space<vmem>>, vector<1x32xf32>
    %c8 = arith.constant 8 : index
    %c0_8 = arith.constant 0 : index
    %7 = vector.load %arg4[%c8, %c0_8] : memref<12x32xf32, #tpu.memory_space<vmem>>, vector<1x32xf32>
    %cst_9 = arith.constant dense<0.000000e+00> : vector<16x32xf32>
    %8 = tpu.matmul %0, %2, %cst_9 {dimension_numbers = #tpu.dot_dimension_numbers<[1], [1], [0], [0], [0, 0, 1, 0], [], []>} : vector<16x128xf32>, vector<32x128xf32>, vector<16x32xf32> -> vector<16x32xf32>
    %9 = vector.broadcast %5 : vector<1x32xf32> to vector<16x32xf32>
    %10 = arith.addf %8, %9 : vector<16x32xf32>
    %cst_10 = arith.constant dense<0.000000e+00> : vector<16x32xf32>
    %11 = tpu.matmul %0, %3, %cst_10 {dimension_numbers = #tpu.dot_dimension_numbers<[1], [1], [0], [0], [0, 0, 1, 0], [], []>} : vector<16x128xf32>, vector<32x128xf32>, vector<16x32xf32> -> vector<16x32xf32>
    %12 = vector.broadcast %6 : vector<1x32xf32> to vector<16x32xf32>
    %13 = arith.addf %11, %12 : vector<16x32xf32>
    %cst_11 = arith.constant dense<0.000000e+00> : vector<16x32xf32>
    %14 = tpu.matmul %0, %4, %cst_11 {dimension_numbers = #tpu.dot_dimension_numbers<[1], [1], [0], [0], [0, 0, 1, 0], [], []>} : vector<16x128xf32>, vector<32x128xf32>, vector<16x32xf32> -> vector<16x32xf32>
    %15 = vector.broadcast %7 : vector<1x32xf32> to vector<16x32xf32>
    %16 = arith.addf %14, %15 : vector<16x32xf32>
    %cst_12 = arith.constant dense<0.000000e+00> : vector<16x16xf32>
    %17 = tpu.matmul %10, %13, %cst_12 {dimension_numbers = #tpu.dot_dimension_numbers<[1], [1], [0], [0], [0, 0, 1, 0], [], []>} : vector<16x32xf32>, vector<16x32xf32>, vector<16x16xf32> -> vector<16x16xf32>
    %cst_13 = arith.constant dense<0xFF800000> : vector<16xf32>
    %18 = vector.multi_reduction <maximumf>, %17, %cst_13 [1] : vector<16x16xf32> to vector<16xf32>
    %19 = vector.shape_cast %18 : vector<16xf32> to vector<16x1xf32>
    %20 = vector.broadcast %19 : vector<16x1xf32> to vector<16x16xf32>
    %21 = arith.subf %17, %20 : vector<16x16xf32>
    %22 = math.exp %21 : vector<16x16xf32>
    %cst_14 = arith.constant dense<0.000000e+00> : vector<16xf32>
    %23 = vector.multi_reduction <add>, %22, %cst_14 [1] : vector<16x16xf32> to vector<16xf32>
    %24 = vector.shape_cast %23 : vector<16xf32> to vector<16x1xf32>
    %25 = tpu.reciprocal %24 {approx = true} : vector<16x1xf32> -> vector<16x1xf32>
    %26 = vector.broadcast %25 : vector<16x1xf32> to vector<16x16xf32>
    %27 = arith.mulf %22, %26 : vector<16x16xf32>
    %cst_15 = arith.constant dense<0.000000e+00> : vector<16x32xf32>
    %28 = tpu.matmul %27, %16, %cst_15 {dimension_numbers = #tpu.dot_dimension_numbers<[1], [0], [0], [1], [0, 0, 1, 1], [], []>} : vector<16x16xf32>, vector<16x32xf32>, vector<16x32xf32> -> vector<16x32xf32>
    %c0_16 = arith.constant 0 : index
    %c0_17 = arith.constant 0 : index
    %c0_18 = arith.constant 0 : index
    %29 = vector.load %arg5[%c0_16, %c0_17, %c0_18] : memref<4x32x128xf32, #tpu.memory_space<vmem>>, vector<1x32x128xf32>
    %30 = vector.shape_cast %29 : vector<1x32x128xf32> to vector<32x128xf32>
    %cst_19 = arith.constant dense<0.000000e+00> : vector<16x128xf32>
    %31 = tpu.matmul %28, %30, %cst_19 {dimension_numbers = #tpu.dot_dimension_numbers<[1], [0], [0], [1], [0, 0, 1, 1], [], []>} : vector<16x32xf32>, vector<32x128xf32>, vector<16x128xf32> -> vector<16x128xf32>
    %32 = arith.addf %1, %31 : vector<16x128xf32>
    %c32 = arith.constant 32 : index
    %c0_20 = arith.constant 0 : index
    %33 = vector.load %arg3[%c32, %c0_20] : memref<384x128xf32, #tpu.memory_space<vmem>>, vector<32x128xf32>
    %c160 = arith.constant 160 : index
    %c0_21 = arith.constant 0 : index
    %34 = vector.load %arg3[%c160, %c0_21] : memref<384x128xf32, #tpu.memory_space<vmem>>, vector<32x128xf32>
    %c288 = arith.constant 288 : index
    %c0_22 = arith.constant 0 : index
    %35 = vector.load %arg3[%c288, %c0_22] : memref<384x128xf32, #tpu.memory_space<vmem>>, vector<32x128xf32>
    %c1 = arith.constant 1 : index
    %c0_23 = arith.constant 0 : index
    %36 = vector.load %arg4[%c1, %c0_23] : memref<12x32xf32, #tpu.memory_space<vmem>>, vector<1x32xf32>
    %c5 = arith.constant 5 : index
    %c0_24 = arith.constant 0 : index
    %37 = vector.load %arg4[%c5, %c0_24] : memref<12x32xf32, #tpu.memory_space<vmem>>, vector<1x32xf32>
    %c9 = arith.constant 9 : index
    %c0_25 = arith.constant 0 : index
    %38 = vector.load %arg4[%c9, %c0_25] : memref<12x32xf32, #tpu.memory_space<vmem>>, vector<1x32xf32>
    %cst_26 = arith.constant dense<0.000000e+00> : vector<16x32xf32>
    %39 = tpu.matmul %0, %33, %cst_26 {dimension_numbers = #tpu.dot_dimension_numbers<[1], [1], [0], [0], [0, 0, 1, 0], [], []>} : vector<16x128xf32>, vector<32x128xf32>, vector<16x32xf32> -> vector<16x32xf32>
    %40 = vector.broadcast %36 : vector<1x32xf32> to vector<16x32xf32>
    %41 = arith.addf %39, %40 : vector<16x32xf32>
    %cst_27 = arith.constant dense<0.000000e+00> : vector<16x32xf32>
    %42 = tpu.matmul %0, %34, %cst_27 {dimension_numbers = #tpu.dot_dimension_numbers<[1], [1], [0], [0], [0, 0, 1, 0], [], []>} : vector<16x128xf32>, vector<32x128xf32>, vector<16x32xf32> -> vector<16x32xf32>
    %43 = vector.broadcast %37 : vector<1x32xf32> to vector<16x32xf32>
    %44 = arith.addf %42, %43 : vector<16x32xf32>
    %cst_28 = arith.constant dense<0.000000e+00> : vector<16x32xf32>
    %45 = tpu.matmul %0, %35, %cst_28 {dimension_numbers = #tpu.dot_dimension_numbers<[1], [1], [0], [0], [0, 0, 1, 0], [], []>} : vector<16x128xf32>, vector<32x128xf32>, vector<16x32xf32> -> vector<16x32xf32>
    %46 = vector.broadcast %38 : vector<1x32xf32> to vector<16x32xf32>
    %47 = arith.addf %45, %46 : vector<16x32xf32>
    %cst_29 = arith.constant dense<0.000000e+00> : vector<16x16xf32>
    %48 = tpu.matmul %41, %44, %cst_29 {dimension_numbers = #tpu.dot_dimension_numbers<[1], [1], [0], [0], [0, 0, 1, 0], [], []>} : vector<16x32xf32>, vector<16x32xf32>, vector<16x16xf32> -> vector<16x16xf32>
    %cst_30 = arith.constant dense<0xFF800000> : vector<16xf32>
    %49 = vector.multi_reduction <maximumf>, %48, %cst_30 [1] : vector<16x16xf32> to vector<16xf32>
    %50 = vector.shape_cast %49 : vector<16xf32> to vector<16x1xf32>
    %51 = vector.broadcast %50 : vector<16x1xf32> to vector<16x16xf32>
    %52 = arith.subf %48, %51 : vector<16x16xf32>
    %53 = math.exp %52 : vector<16x16xf32>
    %cst_31 = arith.constant dense<0.000000e+00> : vector<16xf32>
    %54 = vector.multi_reduction <add>, %53, %cst_31 [1] : vector<16x16xf32> to vector<16xf32>
    %55 = vector.shape_cast %54 : vector<16xf32> to vector<16x1xf32>
    %56 = tpu.reciprocal %55 {approx = true} : vector<16x1xf32> -> vector<16x1xf32>
    %57 = vector.broadcast %56 : vector<16x1xf32> to vector<16x16xf32>
    %58 = arith.mulf %53, %57 : vector<16x16xf32>
    %cst_32 = arith.constant dense<0.000000e+00> : vector<16x32xf32>
    %59 = tpu.matmul %58, %47, %cst_32 {dimension_numbers = #tpu.dot_dimension_numbers<[1], [0], [0], [1], [0, 0, 1, 1], [], []>} : vector<16x16xf32>, vector<16x32xf32>, vector<16x32xf32> -> vector<16x32xf32>
    %c1_33 = arith.constant 1 : index
    %c0_34 = arith.constant 0 : index
    %c0_35 = arith.constant 0 : index
    %60 = vector.load %arg5[%c1_33, %c0_34, %c0_35] : memref<4x32x128xf32, #tpu.memory_space<vmem>>, vector<1x32x128xf32>
    %61 = vector.shape_cast %60 : vector<1x32x128xf32> to vector<32x128xf32>
    %cst_36 = arith.constant dense<0.000000e+00> : vector<16x128xf32>
    %62 = tpu.matmul %59, %61, %cst_36 {dimension_numbers = #tpu.dot_dimension_numbers<[1], [0], [0], [1], [0, 0, 1, 1], [], []>} : vector<16x32xf32>, vector<32x128xf32>, vector<16x128xf32> -> vector<16x128xf32>
    %63 = arith.addf %32, %62 : vector<16x128xf32>
    %c64 = arith.constant 64 : index
    %c0_37 = arith.constant 0 : index
    %64 = vector.load %arg3[%c64, %c0_37] : memref<384x128xf32, #tpu.memory_space<vmem>>, vector<32x128xf32>
    %c192 = arith.constant 192 : index
    %c0_38 = arith.constant 0 : index
    %65 = vector.load %arg3[%c192, %c0_38] : memref<384x128xf32, #tpu.memory_space<vmem>>, vector<32x128xf32>
    %c320 = arith.constant 320 : index
    %c0_39 = arith.constant 0 : index
    %66 = vector.load %arg3[%c320, %c0_39] : memref<384x128xf32, #tpu.memory_space<vmem>>, vector<32x128xf32>
    %c2 = arith.constant 2 : index
    %c0_40 = arith.constant 0 : index
    %67 = vector.load %arg4[%c2, %c0_40] : memref<12x32xf32, #tpu.memory_space<vmem>>, vector<1x32xf32>
    %c6 = arith.constant 6 : index
    %c0_41 = arith.constant 0 : index
    %68 = vector.load %arg4[%c6, %c0_41] : memref<12x32xf32, #tpu.memory_space<vmem>>, vector<1x32xf32>
    %c10 = arith.constant 10 : index
    %c0_42 = arith.constant 0 : index
    %69 = vector.load %arg4[%c10, %c0_42] : memref<12x32xf32, #tpu.memory_space<vmem>>, vector<1x32xf32>
    %cst_43 = arith.constant dense<0.000000e+00> : vector<16x32xf32>
    %70 = tpu.matmul %0, %64, %cst_43 {dimension_numbers = #tpu.dot_dimension_numbers<[1], [1], [0], [0], [0, 0, 1, 0], [], []>} : vector<16x128xf32>, vector<32x128xf32>, vector<16x32xf32> -> vector<16x32xf32>
    %71 = vector.broadcast %67 : vector<1x32xf32> to vector<16x32xf32>
    %72 = arith.addf %70, %71 : vector<16x32xf32>
    %cst_44 = arith.constant dense<0.000000e+00> : vector<16x32xf32>
    %73 = tpu.matmul %0, %65, %cst_44 {dimension_numbers = #tpu.dot_dimension_numbers<[1], [1], [0], [0], [0, 0, 1, 0], [], []>} : vector<16x128xf32>, vector<32x128xf32>, vector<16x32xf32> -> vector<16x32xf32>
    %74 = vector.broadcast %68 : vector<1x32xf32> to vector<16x32xf32>
    %75 = arith.addf %73, %74 : vector<16x32xf32>
    %cst_45 = arith.constant dense<0.000000e+00> : vector<16x32xf32>
    %76 = tpu.matmul %0, %66, %cst_45 {dimension_numbers = #tpu.dot_dimension_numbers<[1], [1], [0], [0], [0, 0, 1, 0], [], []>} : vector<16x128xf32>, vector<32x128xf32>, vector<16x32xf32> -> vector<16x32xf32>
    %77 = vector.broadcast %69 : vector<1x32xf32> to vector<16x32xf32>
    %78 = arith.addf %76, %77 : vector<16x32xf32>
    %cst_46 = arith.constant dense<0.000000e+00> : vector<16x16xf32>
    %79 = tpu.matmul %72, %75, %cst_46 {dimension_numbers = #tpu.dot_dimension_numbers<[1], [1], [0], [0], [0, 0, 1, 0], [], []>} : vector<16x32xf32>, vector<16x32xf32>, vector<16x16xf32> -> vector<16x16xf32>
    %cst_47 = arith.constant dense<0xFF800000> : vector<16xf32>
    %80 = vector.multi_reduction <maximumf>, %79, %cst_47 [1] : vector<16x16xf32> to vector<16xf32>
    %81 = vector.shape_cast %80 : vector<16xf32> to vector<16x1xf32>
    %82 = vector.broadcast %81 : vector<16x1xf32> to vector<16x16xf32>
    %83 = arith.subf %79, %82 : vector<16x16xf32>
    %84 = math.exp %83 : vector<16x16xf32>
    %cst_48 = arith.constant dense<0.000000e+00> : vector<16xf32>
    %85 = vector.multi_reduction <add>, %84, %cst_48 [1] : vector<16x16xf32> to vector<16xf32>
    %86 = vector.shape_cast %85 : vector<16xf32> to vector<16x1xf32>
    %87 = tpu.reciprocal %86 {approx = true} : vector<16x1xf32> -> vector<16x1xf32>
    %88 = vector.broadcast %87 : vector<16x1xf32> to vector<16x16xf32>
    %89 = arith.mulf %84, %88 : vector<16x16xf32>
    %cst_49 = arith.constant dense<0.000000e+00> : vector<16x32xf32>
    %90 = tpu.matmul %89, %78, %cst_49 {dimension_numbers = #tpu.dot_dimension_numbers<[1], [0], [0], [1], [0, 0, 1, 1], [], []>} : vector<16x16xf32>, vector<16x32xf32>, vector<16x32xf32> -> vector<16x32xf32>
    %c2_50 = arith.constant 2 : index
    %c0_51 = arith.constant 0 : index
    %c0_52 = arith.constant 0 : index
    %91 = vector.load %arg5[%c2_50, %c0_51, %c0_52] : memref<4x32x128xf32, #tpu.memory_space<vmem>>, vector<1x32x128xf32>
    %92 = vector.shape_cast %91 : vector<1x32x128xf32> to vector<32x128xf32>
    %cst_53 = arith.constant dense<0.000000e+00> : vector<16x128xf32>
    %93 = tpu.matmul %90, %92, %cst_53 {dimension_numbers = #tpu.dot_dimension_numbers<[1], [0], [0], [1], [0, 0, 1, 1], [], []>} : vector<16x32xf32>, vector<32x128xf32>, vector<16x128xf32> -> vector<16x128xf32>
    %94 = arith.addf %63, %93 : vector<16x128xf32>
    %c96 = arith.constant 96 : index
    %c0_54 = arith.constant 0 : index
    %95 = vector.load %arg3[%c96, %c0_54] : memref<384x128xf32, #tpu.memory_space<vmem>>, vector<32x128xf32>
    %c224 = arith.constant 224 : index
    %c0_55 = arith.constant 0 : index
    %96 = vector.load %arg3[%c224, %c0_55] : memref<384x128xf32, #tpu.memory_space<vmem>>, vector<32x128xf32>
    %c352 = arith.constant 352 : index
    %c0_56 = arith.constant 0 : index
    %97 = vector.load %arg3[%c352, %c0_56] : memref<384x128xf32, #tpu.memory_space<vmem>>, vector<32x128xf32>
    %c3 = arith.constant 3 : index
    %c0_57 = arith.constant 0 : index
    %98 = vector.load %arg4[%c3, %c0_57] : memref<12x32xf32, #tpu.memory_space<vmem>>, vector<1x32xf32>
    %c7 = arith.constant 7 : index
    %c0_58 = arith.constant 0 : index
    %99 = vector.load %arg4[%c7, %c0_58] : memref<12x32xf32, #tpu.memory_space<vmem>>, vector<1x32xf32>
    %c11 = arith.constant 11 : index
    %c0_59 = arith.constant 0 : index
    %100 = vector.load %arg4[%c11, %c0_59] : memref<12x32xf32, #tpu.memory_space<vmem>>, vector<1x32xf32>
    %cst_60 = arith.constant dense<0.000000e+00> : vector<16x32xf32>
    %101 = tpu.matmul %0, %95, %cst_60 {dimension_numbers = #tpu.dot_dimension_numbers<[1], [1], [0], [0], [0, 0, 1, 0], [], []>} : vector<16x128xf32>, vector<32x128xf32>, vector<16x32xf32> -> vector<16x32xf32>
    %102 = vector.broadcast %98 : vector<1x32xf32> to vector<16x32xf32>
    %103 = arith.addf %101, %102 : vector<16x32xf32>
    %cst_61 = arith.constant dense<0.000000e+00> : vector<16x32xf32>
    %104 = tpu.matmul %0, %96, %cst_61 {dimension_numbers = #tpu.dot_dimension_numbers<[1], [1], [0], [0], [0, 0, 1, 0], [], []>} : vector<16x128xf32>, vector<32x128xf32>, vector<16x32xf32> -> vector<16x32xf32>
    %105 = vector.broadcast %99 : vector<1x32xf32> to vector<16x32xf32>
    %106 = arith.addf %104, %105 : vector<16x32xf32>
    %cst_62 = arith.constant dense<0.000000e+00> : vector<16x32xf32>
    %107 = tpu.matmul %0, %97, %cst_62 {dimension_numbers = #tpu.dot_dimension_numbers<[1], [1], [0], [0], [0, 0, 1, 0], [], []>} : vector<16x128xf32>, vector<32x128xf32>, vector<16x32xf32> -> vector<16x32xf32>
    %108 = vector.broadcast %100 : vector<1x32xf32> to vector<16x32xf32>
    %109 = arith.addf %107, %108 : vector<16x32xf32>
    %cst_63 = arith.constant dense<0.000000e+00> : vector<16x16xf32>
    %110 = tpu.matmul %103, %106, %cst_63 {dimension_numbers = #tpu.dot_dimension_numbers<[1], [1], [0], [0], [0, 0, 1, 0], [], []>} : vector<16x32xf32>, vector<16x32xf32>, vector<16x16xf32> -> vector<16x16xf32>
    %cst_64 = arith.constant dense<0xFF800000> : vector<16xf32>
    %111 = vector.multi_reduction <maximumf>, %110, %cst_64 [1] : vector<16x16xf32> to vector<16xf32>
    %112 = vector.shape_cast %111 : vector<16xf32> to vector<16x1xf32>
    %113 = vector.broadcast %112 : vector<16x1xf32> to vector<16x16xf32>
    %114 = arith.subf %110, %113 : vector<16x16xf32>
    %115 = math.exp %114 : vector<16x16xf32>
    %cst_65 = arith.constant dense<0.000000e+00> : vector<16xf32>
    %116 = vector.multi_reduction <add>, %115, %cst_65 [1] : vector<16x16xf32> to vector<16xf32>
    %117 = vector.shape_cast %116 : vector<16xf32> to vector<16x1xf32>
    %118 = tpu.reciprocal %117 {approx = true} : vector<16x1xf32> -> vector<16x1xf32>
    %119 = vector.broadcast %118 : vector<16x1xf32> to vector<16x16xf32>
    %120 = arith.mulf %115, %119 : vector<16x16xf32>
    %cst_66 = arith.constant dense<0.000000e+00> : vector<16x32xf32>
    %121 = tpu.matmul %120, %109, %cst_66 {dimension_numbers = #tpu.dot_dimension_numbers<[1], [0], [0], [1], [0, 0, 1, 1], [], []>} : vector<16x16xf32>, vector<16x32xf32>, vector<16x32xf32> -> vector<16x32xf32>
    %c3_67 = arith.constant 3 : index
    %c0_68 = arith.constant 0 : index
    %c0_69 = arith.constant 0 : index
    %122 = vector.load %arg5[%c3_67, %c0_68, %c0_69] : memref<4x32x128xf32, #tpu.memory_space<vmem>>, vector<1x32x128xf32>
    %123 = vector.shape_cast %122 : vector<1x32x128xf32> to vector<32x128xf32>
    %cst_70 = arith.constant dense<0.000000e+00> : vector<16x128xf32>
    %124 = tpu.matmul %121, %123, %cst_70 {dimension_numbers = #tpu.dot_dimension_numbers<[1], [0], [0], [1], [0, 0, 1, 1], [], []>} : vector<16x32xf32>, vector<32x128xf32>, vector<16x128xf32> -> vector<16x128xf32>
    %125 = arith.addf %94, %124 : vector<16x128xf32>
    %c0_71 = arith.constant 0 : index
    %c0_72 = arith.constant 0 : index
    %126 = vector.load %arg6[%c0_71, %c0_72] : memref<1x128xf32, #tpu.memory_space<vmem>>, vector<1x128xf32>
    %127 = vector.broadcast %126 : vector<1x128xf32> to vector<16x128xf32>
    %128 = arith.addf %125, %127 : vector<16x128xf32>
    %cst_73 = arith.constant dense<0xFF800000> : vector<128xf32>
    %129 = vector.multi_reduction <maximumf>, %128, %cst_73 [0] : vector<16x128xf32> to vector<128xf32>
    %130 = vector.shape_cast %129 : vector<128xf32> to vector<1x128xf32>
    %c0_74 = arith.constant 0 : index
    %c0_75 = arith.constant 0 : index
    %131 = vector.load %arg7[%c0_74, %c0_75] : memref<1x128xf32, #tpu.memory_space<vmem>>, vector<1x128xf32>
    tpu.vector_store %arg7[%c0_74, %c0_75], %130 {strides = array<i32>} : memref<1x128xf32, #tpu.memory_space<vmem>>, vector<1x128xf32>,
    return
  }
  func.func @transform_0(%arg0: i32) -> i32 {
    %c0_i32 = arith.constant 0 : i32
    %c0_i32_0 = arith.constant 0 : i32
    return %c0_i32 : i32
  }
  func.func @transform_1(%arg0: i32) -> (i32, i32) {
    %c0_i32 = arith.constant 0 : i32
    %c0_i32_0 = arith.constant 0 : i32
    %c0_i32_1 = arith.constant 0 : i32
    return %c0_i32, %c0_i32_0 : i32, i32
  }
  func.func @transform_2(%arg0: i32) -> (i32, i32) {
    %c0_i32 = arith.constant 0 : i32
    %c0_i32_0 = arith.constant 0 : i32
    %c0_i32_1 = arith.constant 0 : i32
    return %c0_i32, %c0_i32_0 : i32, i32
  }
  func.func @transform_3(%arg0: i32) -> (i32, i32) {
    %c0_i32 = arith.constant 0 : i32
    %c0_i32_0 = arith.constant 0 : i32
    %c0_i32_1 = arith.constant 0 : i32
    return %c0_i32, %c0_i32_0 : i32, i32
  }
  func.func @transform_4(%arg0: i32) -> (i32, i32, i32) {
    %c0_i32 = arith.constant 0 : i32
    %c0_i32_0 = arith.constant 0 : i32
    %c0_i32_1 = arith.constant 0 : i32
    %c0_i32_2 = arith.constant 0 : i32
    return %c0_i32, %c0_i32_0, %c0_i32_1 : i32, i32, i32
  }
  func.func @transform_5(%arg0: i32) -> (i32, i32) {
    %c0_i32 = arith.constant 0 : i32
    %c0_i32_0 = arith.constant 0 : i32
    %c0_i32_1 = arith.constant 0 : i32
    return %c0_i32, %c0_i32_0 : i32, i32
  }
  func.func @transform_6(%arg0: i32) -> (i32, i32) {
    %c0_i32 = arith.constant 0 : i32
    %c0_i32_0 = arith.constant 0 : i32
    %c0_i32_1 = arith.constant 0 : i32
    return %c0_i32, %c0_i32_0 : i32, i32
  }
}

</mosaic_0001>

<llo_original>
// kernel: tpu_custom_call.1
$region0: #{tpu_custom_call.1}
  #allocation0 [shape = 'u32[]', space=smem, size = 0x4, offset = 0x4, fixed_abs, tag = 'smem constant byte address 0x4 - core index']
  #allocation1 [shape = 'u32[144,128]{1,0:T(1,128)}', space=vmem, size = 0x12000, scoped, tag = 'internal scratch']
  #allocation2 [shape = 's32[1]{0:T(128)S(6)}', space=smem, size = 0x200, scoped, tag = 'scoped memory for tpu_custom_call.1']
  %s0 = inlined_call_operand.<no memory space> [shape: s32[1], index: 0, kind: input, shape index: {}]
  %s1 = inlined_call_operand.hbm [shape: f32[16,128], index: 1, kind: input, shape index: {}]
  %s2 = inlined_call_operand.hbm [shape: f32[384,128], index: 2, kind: input, shape index: {}]
  %s3 = inlined_call_operand.hbm [shape: f32[12,32], index: 3, kind: input, shape index: {}]
  %s4 = inlined_call_operand.hbm [shape: f32[4,32,128], index: 4, kind: input, shape index: {}]
  %s5 = inlined_call_operand.vmem [shape: f32[1,128], index: 5, kind: input, shape index: {}]
  %s6 = inlined_call_operand.hbm [shape: f32[1,128], index: 6, kind: output, shape index: {}]
  %s7 = sld [smem:[#allocation0]]
  $region50: #{tpu_custom_call.1} parent=0
    _
  %s9 = ssub.s32 1, %s7
  %s10 = scalar_select 0, %s9, %s7
  %11 = sst [smem:[#allocation2]] %s0
  $region1: #{tpu_custom_call.1} parent=0
    #allocation3 [shape = 'u8[8192]{0}', space=vmem, size = 0x2000, scoped, tag = 'input window, operand 1, single buffered']
    #allocation4 [shape = 's32[1]{0}', space=sflag, size = 0x4, scoped, tag = 'scoped memory for tpu_custom_call.1']
    #allocation5 [shape = 's32[1]{0}', space=sflag, size = 0x4, scoped, tag = 'scoped memory for tpu_custom_call.1']
    #allocation6 [shape = 'u8[196608]{0}', space=vmem, size = 0x30000, scoped, tag = 'input window, operand 2, single buffered']
    #allocation7 [shape = 's32[1]{0}', space=sflag, size = 0x4, scoped, tag = 'scoped memory for tpu_custom_call.1']
    #allocation8 [shape = 'u8[8192]{0}', space=vmem, size = 0x2000, scoped, tag = 'input window, operand 3, single buffered']
    #allocation9 [shape = 'u8[65536]{0}', space=vmem, size = 0x10000, scoped, tag = 'input window, operand 4, single buffered']
    #allocation10 [shape = 's32[1]{0}', space=sflag, size = 0x4, scoped, tag = 'scoped memory for tpu_custom_call.1']
    #allocation11 [shape = 'u8[512]{0}', space=vmem, size = 0x400, scoped, tag = 'output window, operand 0, single buffered']
    %12 = vsyncpa [#allocation4], 0
    %13 = vsyncpa [#allocation7], 0
    %14 = vsyncpa [#allocation10], 0
    %15 = vsyncpa [#allocation5], 0
    // Predicated region
    $region2: #{tpu_custom_call.1} parent=1 // pred_check
      _
    $region3: #{tpu_custom_call.1} parent=1 // pred_check_branch
      %17 = sbr.rel (0) target = $region5
    $region4: #{tpu_custom_call.1} parent=1 // pred_region
      _
    $region5: #{tpu_custom_call.1} parent=1 // pred_fallthru
      _
    // Predicated region
    $region6: #{tpu_custom_call.1} parent=1 // pred_check
      _
    $region7: #{tpu_custom_call.1} parent=1 // pred_check_branch
      %19 = sbr.rel (0) target = $region9
    $region8: #{tpu_custom_call.1} parent=1 // pred_region
      %s21 = ssub.s32 256, 256
      %22 = vsyncadd [#allocation4], %s21
      %s23 = sshll.u32 [#allocation3], 4
      %s24 = int_to_ptr.vmem [resolvable:$true] %s23
      %29 = dma.hbm_to_vmem [thread:$0]  %s1, 256, %s24, [#allocation4], 128, 128, 8
    $region9: #{tpu_custom_call.1} parent=1 // pred_fallthru
      _
    // Predicated region
    $region10: #{tpu_custom_call.1} parent=1 // pred_check
      _
    $region11: #{tpu_custom_call.1} parent=1 // pred_check_branch
      %31 = sbr.rel (0) target = $region13
    $region12: #{tpu_custom_call.1} parent=1 // pred_region
      %s33 = ssub.s32 6144, 6144
      %34 = vsyncadd [#allocation7], %s33
      %s35 = sshll.u32 [#allocation6], 4
      %s36 = int_to_ptr.vmem [resolvable:$true] %s35
      %41 = dma.hbm_to_vmem [thread:$0]  %s2, 6144, %s36, [#allocation7], 128, 128, 8
    $region13: #{tpu_custom_call.1} parent=1 // pred_fallthru
      _
    // Predicated region
    $region14: #{tpu_custom_call.1} parent=1 // pred_check
      _
    $region15: #{tpu_custom_call.1} parent=1 // pred_check_branch
      %43 = sbr.rel (0) target = $region17
    $region16: #{tpu_custom_call.1} parent=1 // pred_region
      %s45 = ssub.s32 256, 256
      %46 = vsyncadd [#allocation7], %s45
      %s47 = sshll.u32 [#allocation8], 4
      %s48 = int_to_ptr.vmem [resolvable:$true] %s47
      %53 = dma.hbm_to_vmem [thread:$0]  %s3, 256, %s48, [#allocation7], 128, 128, 8
    $region17: #{tpu_custom_call.1} parent=1 // pred_fallthru
      _
    // Predicated region
    $region18: #{tpu_custom_call.1} parent=1 // pred_check
      _
    $region19: #{tpu_custom_call.1} parent=1 // pred_check_branch
      %55 = sbr.rel (0) target = $region21
    $region20: #{tpu_custom_call.1} parent=1 // pred_region
      %s57 = ssub.s32 2048, 2048
      %58 = vsyncadd [#allocation10], %s57
      %s59 = sshll.u32 [#allocation9], 4
      %s60 = int_to_ptr.vmem [resolvable:$true] %s59
      %65 = dma.hbm_to_vmem [thread:$0]  %s4, 2048, %s60, [#allocation10], 128, 128, 8
    $region21: #{tpu_custom_call.1} parent=1 // pred_fallthru
      _
    // Predicated region
    $region22: #{tpu_custom_call.1} parent=1 // pred_check
      _
    $region23: #{tpu_custom_call.1} parent=1 // pred_check_branch
      %67 = sbr.rel (0) target = $region25
    $region24: #{tpu_custom_call.1} parent=1 // pred_region
      _
    $region25: #{tpu_custom_call.1} parent=1 // pred_fallthru
      _
    // Predicated region
    $region26: #{tpu_custom_call.1} parent=1 // pred_check
      _
    $region27: #{tpu_custom_call.1} parent=1 // pred_check_branch
      %69 = sbr.rel (0) target = $region29
    $region28: #{tpu_custom_call.1} parent=1 // pred_region
      %70 = dma.done [#allocation4], 256
    $region29: #{tpu_custom_call.1} parent=1 // pred_fallthru
      _
    // Predicated region
    $region30: #{tpu_custom_call.1} parent=1 // pred_check
      _
    $region31: #{tpu_custom_call.1} parent=1 // pred_check_branch
      %72 = sbr.rel (0) target = $region33
    $region32: #{tpu_custom_call.1} parent=1 // pred_region
      %73 = dma.done [#allocation7], 6144
    $region33: #{tpu_custom_call.1} parent=1 // pred_fallthru
      _
    // Predicated region
    $region34: #{tpu_custom_call.1} parent=1 // pred_check
      _
    $region35: #{tpu_custom_call.1} parent=1 // pred_check_branch
      %75 = sbr.rel (0) target = $region37
    $region36: #{tpu_custom_call.1} parent=1 // pred_region
      %76 = dma.done [#allocation7], 256
    $region37: #{tpu_custom_call.1} parent=1 // pred_fallthru
      _
    // Predicated region
    $region38: #{tpu_custom_call.1} parent=1 // pred_check
      _
    $region39: #{tpu_custom_call.1} parent=1 // pred_check_branch
      %78 = sbr.rel (0) target = $region41
    $region40: #{tpu_custom_call.1} parent=1 // pred_region
      %79 = dma.done [#allocation10], 2048
    $region41: #{tpu_custom_call.1} parent=1 // pred_fallthru
      _
    %v80 = vld [vmem:[#allocation3] sm:$0xff]
    %v81 = vld [vmem:[#allocation3 + $0x8] sm:$0xff]
    %v82 = vld [vmem:[#allocation6] sm:$0xff]
    %v83 = vld [vmem:[#allocation6 + $0x8] sm:$0xff]
    %v84 = vld [vmem:[#allocation6 + $0x10] sm:$0xff]
    %v85 = vld [vmem:[#allocation6 + $0x18] sm:$0xff]
    %v86 = vld [vmem:[#allocation6 + $0x80] sm:$0xff]
    %v87 = vld [vmem:[#allocation6 + $0x88] sm:$0xff]
    %v88 = vld [vmem:[#allocation6 + $0x90] sm:$0xff]
    %v89 = vld [vmem:[#allocation6 + $0x98] sm:$0xff]
    %v90 = vld [vmem:[#allocation6 + $0x100] sm:$0xff]
    %v91 = vld [vmem:[#allocation6 + $0x108] sm:$0xff]
    %v92 = vld [vmem:[#allocation6 + $0x110] sm:$0xff]
    %v93 = vld [vmem:[#allocation6 + $0x118] sm:$0xff]
    %v94 = vld [vmem:[#allocation8] sm:$0x1]
    %v95 = vld [vmem:[#allocation8 + $0x4] sm:$0x1]
    %v96 = vld [vmem:[#allocation8 + $0x8] sm:$0x1]
    %v97 = vlaneseq
    %v98 = vshrl.u32 %v97, 7
    %v99 = vsub.s32 0, %v98
    %v100 = vrot.slane %v94, %v99
    %101 = vmatprep.subr.mxu0 0.0
    %102 = vmatpush1.xpose.msra.mxu0 %v82
    %103 = vmatprep.subr.mxu0 0.0
    %104 = vmatpush1.xpose.msra.mxu0 %v83
    %105 = vmatprep.subr.mxu0 0.0
    %106 = vmatpush1.xpose.msra.mxu0 %v84
    %107 = vmatprep.subr.mxu0 0.0
    %108 = vmatpush1.xpose.msra.mxu0 %v85
    %109 = vmatprep.subr.mxu0 0.0
    %110 = vmatpush1.xpose.msra.mxu0 0.0
    %111 = vmatprep.subr.mxu0 0.0
    %112 = vmatpush1.xpose.msra.mxu0 0.0
    %113 = vmatprep.subr.mxu0 0.0
    %114 = vmatpush1.xpose.msra.mxu0 0.0
    %115 = vmatprep.subr.mxu0 0.0
    %116 = vmatpush1.xpose.msra.mxu0 0.0
    %117 = vmatprep.subr.mxu0 0.0
    %118 = vmatpush1.xpose.msra.mxu0 0.0
    %119 = vmatprep.subr.mxu0 0.0
    %120 = vmatpush1.xpose.msra.mxu0 0.0
    %121 = vmatprep.subr.mxu0 0.0
    %122 = vmatpush1.xpose.msra.mxu0 0.0
    %123 = vmatprep.subr.mxu0 0.0
    %124 = vmatpush1.xpose.msra.mxu0 0.0
    %125 = vmatprep.subr.mxu0 0.0
    %126 = vmatpush1.xpose.msra.mxu0 0.0
    %127 = vmatprep.subr.mxu0 0.0
    %128 = vmatpush1.xpose.msra.mxu0 0.0
    %129 = vmatprep.subr.mxu0 0.0
    %130 = vmatpush1.xpose.msra.mxu0 0.0
    %131 = vmatprep.subr.mxu0 0.0
    %132 = vmatpush1.xpose.msra.mxu0 0.0
    %133 = vmatprep.subr.mxu0 0.0
    %134 = vmatpush1.xpose.msra.mxu0 0.0
    %135 = vmatprep.subr.mxu0 0.0
    %136 = vmatpush1.xpose.msra.mxu0 0.0
    %137 = vmatprep.subr.mxu0 0.0
    %138 = vmatpush1.xpose.msra.mxu0 0.0
    %139 = vmatprep.subr.mxu0 0.0
    %140 = vmatpush1.xpose.msra.mxu0 0.0
    %141 = vmatprep.subr.mxu0 0.0
    %142 = vmatpush1.xpose.msra.mxu0 0.0
    %143 = vmatprep.subr.mxu0 0.0
    %144 = vmatpush1.xpose.msra.mxu0 0.0
    %145 = vmatprep.subr.mxu0 0.0
    %146 = vmatpush1.xpose.msra.mxu0 0.0
    %147 = vmatprep.subr.mxu0 0.0
    %148 = vmatpush1.xpose.msra.mxu0 0.0
    %149 = vmatprep.subr.mxu0 0.0
    %150 = vmatpush1.xpose.msra.mxu0 0.0
    %151 = vmatprep.subr.mxu0 0.0
    %152 = vmatpush1.xpose.msra.mxu0 0.0
    %153 = vmatprep.subr.mxu0 0.0
    %154 = vmatpush1.xpose.msra.mxu0 0.0
    %155 = vmatprep.subr.mxu0 0.0
    %156 = vmatpush1.xpose.msra.mxu0 0.0
    %157 = vmatprep.subr.mxu0 0.0
    %158 = vmatpush1.xpose.msra.mxu0 0.0
    %159 = vmatprep.subr.mxu0 0.0
    %160 = vmatpush1.xpose.msra.mxu0 0.0
    %161 = vmatprep.subr.mxu0 0.0
    %162 = vmatpush1.xpose.msra.mxu0 0.0
    %163 = vmatprep.subr.mxu0 0.0
    %164 = vmatpush1.xpose.msra.mxu0 0.0
    %165 = vmatprep.mubr.f32.mxu0 0.0
    %166 = vmatmul.mubr.f32.gmra.mrb[0].mxu0 %v80
    %v167 = vpop.f32.mrb[0].mxu0
    %v168 = vadd.f32 %v100, %v167
    %v169 = vpop.f32.mrb[0].mxu0
    %170 = vmatprep.mubr.f32.mxu0 0.0
    %171 = vmatmul.mubr.f32.gmra.mrb[0].mxu0 %v81
    %v172 = vpop.f32.mrb[0].mxu0
    %v173 = vadd.f32 %v100, %v172
    %v174 = vpop.f32.mrb[0].mxu0
    %175 = vdwg.mxu0
    %v176 = vlaneseq
    %v177 = vshrl.u32 %v176, 7
    %v178 = vsub.s32 0, %v177
    %v179 = vrot.slane %v95, %v178
    %180 = vmatprep.subr.mxu0 0.0
    %181 = vmatpush1.xpose.msra.mxu0 %v86
    %182 = vmatprep.subr.mxu0 0.0
    %183 = vmatpush1.xpose.msra.mxu0 %v87
    %184 = vmatprep.subr.mxu0 0.0
    %185 = vmatpush1.xpose.msra.mxu0 %v88
    %186 = vmatprep.subr.mxu0 0.0
    %187 = vmatpush1.xpose.msra.mxu0 %v89
    %188 = vmatprep.subr.mxu0 0.0
    %189 = vmatpush1.xpose.msra.mxu0 0.0
    %190 = vmatprep.subr.mxu0 0.0
    %191 = vmatpush1.xpose.msra.mxu0 0.0
    %192 = vmatprep.subr.mxu0 0.0
    %193 = vmatpush1.xpose.msra.mxu0 0.0
    %194 = vmatprep.subr.mxu0 0.0
    %195 = vmatpush1.xpose.msra.mxu0 0.0
    %196 = vmatprep.subr.mxu0 0.0
    %197 = vmatpush1.xpose.msra.mxu0 0.0
    %198 = vmatprep.subr.mxu0 0.0
    %199 = vmatpush1.xpose.msra.mxu0 0.0
    %200 = vmatprep.subr.mxu0 0.0
    %201 = vmatpush1.xpose.msra.mxu0 0.0
    %202 = vmatprep.subr.mxu0 0.0
    %203 = vmatpush1.xpose.msra.mxu0 0.0
    %204 = vmatprep.subr.mxu0 0.0
    %205 = vmatpush1.xpose.msra.mxu0 0.0
    %206 = vmatprep.subr.mxu0 0.0
    %207 = vmatpush1.xpose.msra.mxu0 0.0
    %208 = vmatprep.subr.mxu0 0.0
    %209 = vmatpush1.xpose.msra.mxu0 0.0
    %210 = vmatprep.subr.mxu0 0.0
    %211 = vmatpush1.xpose.msra.mxu0 0.0
    %212 = vmatprep.subr.mxu0 0.0
    %213 = vmatpush1.xpose.msra.mxu0 0.0
    %214 = vmatprep.subr.mxu0 0.0
    %215 = vmatpush1.xpose.msra.mxu0 0.0
    %216 = vmatprep.subr.mxu0 0.0
    %217 = vmatpush1.xpose.msra.mxu0 0.0
    %218 = vmatprep.subr.mxu0 0.0
    %219 = vmatpush1.xpose.msra.mxu0 0.0
    %220 = vmatprep.subr.mxu0 0.0
    %221 = vmatpush1.xpose.msra.mxu0 0.0
    %222 = vmatprep.subr.mxu0 0.0
    %223 = vmatpush1.xpose.msra.mxu0 0.0
    %224 = vmatprep.subr.mxu0 0.0
    %225 = vmatpush1.xpose.msra.mxu0 0.0
    %226 = vmatprep.subr.mxu0 0.0
    %227 = vmatpush1.xpose.msra.mxu0 0.0
    %228 = vmatprep.subr.mxu0 0.0
    %229 = vmatpush1.xpose.msra.mxu0 0.0
    %230 = vmatprep.subr.mxu0 0.0
    %231 = vmatpush1.xpose.msra.mxu0 0.0
    %232 = vmatprep.subr.mxu0 0.0
    %233 = vmatpush1.xpose.msra.mxu0 0.0
    %234 = vmatprep.subr.mxu0 0.0
    %235 = vmatpush1.xpose.msra.mxu0 0.0
    %236 = vmatprep.subr.mxu0 0.0
    %237 = vmatpush1.xpose.msra.mxu0 0.0
    %238 = vmatprep.subr.mxu0 0.0
    %239 = vmatpush1.xpose.msra.mxu0 0.0
    %240 = vmatprep.subr.mxu0 0.0
    %241 = vmatpush1.xpose.msra.mxu0 0.0
    %242 = vmatprep.subr.mxu0 0.0
    %243 = vmatpush1.xpose.msra.mxu0 0.0
    %244 = vmatprep.mubr.f32.mxu0 0.0
    %245 = vmatmul.mubr.f32.gmra.mrb[0].mxu0 %v80
    %v246 = vpop.f32.mrb[0].mxu0
    %v247 = vadd.f32 %v179, %v246
    %v248 = vpop.f32.mrb[0].mxu0
    %249 = vmatprep.mubr.f32.mxu0 0.0
    %250 = vmatmul.mubr.f32.gmra.mrb[0].mxu0 %v81
    %v251 = vpop.f32.mrb[0].mxu0
    %v252 = vadd.f32 %v179, %v251
    %v253 = vpop.f32.mrb[0].mxu0
    %254 = vdwg.mxu0
    %v255 = vlaneseq
    %v256 = vshrl.u32 %v255, 7
    %v257 = vsub.s32 0, %v256
    %v258 = vrot.slane %v96, %v257
    %259 = vmatprep.subr.mxu0 0.0
    %260 = vmatpush1.xpose.msra.mxu0 %v90
    %261 = vmatprep.subr.mxu0 0.0
    %262 = vmatpush1.xpose.msra.mxu0 %v91
    %263 = vmatprep.subr.mxu0 0.0
    %264 = vmatpush1.xpose.msra.mxu0 %v92
    %265 = vmatprep.subr.mxu0 0.0
    %266 = vmatpush1.xpose.msra.mxu0 %v93
    %267 = vmatprep.subr.mxu0 0.0
    %268 = vmatpush1.xpose.msra.mxu0 0.0
    %269 = vmatprep.subr.mxu0 0.0
    %270 = vmatpush1.xpose.msra.mxu0 0.0
    %271 = vmatprep.subr.mxu0 0.0
    %272 = vmatpush1.xpose.msra.mxu0 0.0
    %273 = vmatprep.subr.mxu0 0.0
    %274 = vmatpush1.xpose.msra.mxu0 0.0
    %275 = vmatprep.subr.mxu0 0.0
    %276 = vmatpush1.xpose.msra.mxu0 0.0
    %277 = vmatprep.subr.mxu0 0.0
    %278 = vmatpush1.xpose.msra.mxu0 0.0
    %279 = vmatprep.subr.mxu0 0.0
    %280 = vmatpush1.xpose.msra.mxu0 0.0
    %281 = vmatprep.subr.mxu0 0.0
    %282 = vmatpush1.xpose.msra.mxu0 0.0
    %283 = vmatprep.subr.mxu0 0.0
    %284 = vmatpush1.xpose.msra.mxu0 0.0
    %285 = vmatprep.subr.mxu0 0.0
    %286 = vmatpush1.xpose.msra.mxu0 0.0
    %287 = vmatprep.subr.mxu0 0.0
    %288 = vmatpush1.xpose.msra.mxu0 0.0
    %289 = vmatprep.subr.mxu0 0.0
    %290 = vmatpush1.xpose.msra.mxu0 0.0
    %291 = vmatprep.subr.mxu0 0.0
    %292 = vmatpush1.xpose.msra.mxu0 0.0
    %293 = vmatprep.subr.mxu0 0.0
    %294 = vmatpush1.xpose.msra.mxu0 0.0
    %295 = vmatprep.subr.mxu0 0.0
    %296 = vmatpush1.xpose.msra.mxu0 0.0
    %297 = vmatprep.subr.mxu0 0.0
    %298 = vmatpush1.xpose.msra.mxu0 0.0
    %299 = vmatprep.subr.mxu0 0.0
    %300 = vmatpush1.xpose.msra.mxu0 0.0
    %301 = vmatprep.subr.mxu0 0.0
    %302 = vmatpush1.xpose.msra.mxu0 0.0
    %303 = vmatprep.subr.mxu0 0.0
    %304 = vmatpush1.xpose.msra.mxu0 0.0
    %305 = vmatprep.subr.mxu0 0.0
    %306 = vmatpush1.xpose.msra.mxu0 0.0
    %307 = vmatprep.subr.mxu0 0.0
    %308 = vmatpush1.xpose.msra.mxu0 0.0
    %309 = vmatprep.subr.mxu0 0.0
    %310 = vmatpush1.xpose.msra.mxu0 0.0
    %311 = vmatprep.subr.mxu0 0.0
    %312 = vmatpush1.xpose.msra.mxu0 0.0
    %313 = vmatprep.subr.mxu0 0.0
    %314 = vmatpush1.xpose.msra.mxu0 0.0
    %315 = vmatprep.subr.mxu0 0.0
    %316 = vmatpush1.xpose.msra.mxu0 0.0
    %317 = vmatprep.subr.mxu0 0.0
    %318 = vmatpush1.xpose.msra.mxu0 0.0
    %319 = vmatprep.subr.mxu0 0.0
    %320 = vmatpush1.xpose.msra.mxu0 0.0
    %321 = vmatprep.subr.mxu0 0.0
    %322 = vmatpush1.xpose.msra.mxu0 0.0
    %323 = vmatprep.mubr.f32.mxu0 0.0
    %324 = vmatmul.mubr.f32.gmra.mrb[0].mxu0 %v80
    %v325 = vpop.f32.mrb[0].mxu0
    %v326 = vadd.f32 %v258, %v325
    %v327 = vpop.f32.mrb[0].mxu0
    %328 = vmatprep.mubr.f32.mxu0 0.0
    %329 = vmatmul.mubr.f32.gmra.mrb[0].mxu0 %v81
    %v330 = vpop.f32.mrb[0].mxu0
    %v331 = vadd.f32 %v258, %v330
    %v332 = vpop.f32.mrb[0].mxu0
    %333 = vdwg.mxu0
    %vm334 = vcmask 261120
    %v336 = vsel %vm334, %v168, 0
    %v339 = vsel %vm334, %v173, 0
    %v342 = vsel %vm334, %v247, 0
    %v345 = vsel %vm334, %v252, 0
    %347 = vmatprep.subr.mxu0 0.0
    %348 = vmatpush1.xpose.msra.mxu0 %v342
    %349 = vmatprep.subr.mxu0 0.0
    %350 = vmatpush1.xpose.msra.mxu0 %v345
    %351 = vmatprep.subr.mxu0 0.0
    %352 = vmatpush1.xpose.msra.mxu0 0.0
    %353 = vmatprep.subr.mxu0 0.0
    %354 = vmatpush1.xpose.msra.mxu0 0.0
    %355 = vmatprep.subr.mxu0 0.0
    %356 = vmatpush1.xpose.msra.mxu0 0.0
    %357 = vmatprep.subr.mxu0 0.0
    %358 = vmatpush1.xpose.msra.mxu0 0.0
    %359 = vmatprep.subr.mxu0 0.0
    %360 = vmatpush1.xpose.msra.mxu0 0.0
    %361 = vmatprep.subr.mxu0 0.0
    %362 = vmatpush1.xpose.msra.mxu0 0.0
    %363 = vmatprep.subr.mxu0 0.0
    %364 = vmatpush1.xpose.msra.mxu0 0.0
    %365 = vmatprep.subr.mxu0 0.0
    %366 = vmatpush1.xpose.msra.mxu0 0.0
    %367 = vmatprep.subr.mxu0 0.0
    %368 = vmatpush1.xpose.msra.mxu0 0.0
    %369 = vmatprep.subr.mxu0 0.0
    %370 = vmatpush1.xpose.msra.mxu0 0.0
    %371 = vmatprep.subr.mxu0 0.0
    %372 = vmatpush1.xpose.msra.mxu0 0.0
    %373 = vmatprep.subr.mxu0 0.0
    %374 = vmatpush1.xpose.msra.mxu0 0.0
    %375 = vmatprep.subr.mxu0 0.0
    %376 = vmatpush1.xpose.msra.mxu0 0.0
    %377 = vmatprep.subr.mxu0 0.0
    %378 = vmatpush1.xpose.msra.mxu0 0.0
    %379 = vmatprep.subr.mxu0 0.0
    %380 = vmatpush1.xpose.msra.mxu0 0.0
    %381 = vmatprep.subr.mxu0 0.0
    %382 = vmatpush1.xpose.msra.mxu0 0.0
    %383 = vmatprep.subr.mxu0 0.0
    %384 = vmatpush1.xpose.msra.mxu0 0.0
    %385 = vmatprep.subr.mxu0 0.0
    %386 = vmatpush1.xpose.msra.mxu0 0.0
    %387 = vmatprep.subr.mxu0 0.0
    %388 = vmatpush1.xpose.msra.mxu0 0.0
    %389 = vmatprep.subr.mxu0 0.0
    %390 = vmatpush1.xpose.msra.mxu0 0.0
    %391 = vmatprep.subr.mxu0 0.0
    %392 = vmatpush1.xpose.msra.mxu0 0.0
    %393 = vmatprep.subr.mxu0 0.0
    %394 = vmatpush1.xpose.msra.mxu0 0.0
    %395 = vmatprep.subr.mxu0 0.0
    %396 = vmatpush1.xpose.msra.mxu0 0.0
    %397 = vmatprep.subr.mxu0 0.0
    %398 = vmatpush1.xpose.msra.mxu0 0.0
    %399 = vmatprep.subr.mxu0 0.0
    %400 = vmatpush1.xpose.msra.mxu0 0.0
    %401 = vmatprep.subr.mxu0 0.0
    %402 = vmatpush1.xpose.msra.mxu0 0.0
    %403 = vmatprep.subr.mxu0 0.0
    %404 = vmatpush1.xpose.msra.mxu0 0.0
    %405 = vmatprep.subr.mxu0 0.0
    %406 = vmatpush1.xpose.msra.mxu0 0.0
    %407 = vmatprep.subr.mxu0 0.0
    %408 = vmatpush1.xpose.msra.mxu0 0.0
    %409 = vmatprep.subr.mxu0 0.0
    %410 = vmatpush1.xpose.msra.mxu0 0.0
    %411 = vmatprep.mubr.f32.mxu0 0.0
    %412 = vmatmul.mubr.f32.gmra.mrb[0].mxu0 %v336
    %v413 = vpop.f32.mrb[0].mxu0
    %v414 = vadd.f32 0.0, %v413
    %v415 = vpop.f32.mrb[0].mxu0
    %416 = vmatprep.mubr.f32.mxu0 0.0
    %417 = vmatmul.mubr.f32.gmra.mrb[0].mxu0 %v339
    %v418 = vpop.f32.mrb[0].mxu0
    %v419 = vadd.f32 0.0, %v418
    %v420 = vpop.f32.mrb[0].mxu0
    %421 = vdwg.mxu0
    %vm422 = vcmask 130048
    %v423 = vsel %vm422, %v414, -inf
    %424 = vmax.xlane.f32.xlu0 %v423
    %v425 = vpop.xlane.xlu0 %424
    %v426 = vsel %vm422, %v419, -inf
    %427 = vmax.xlane.f32.xlu0 %v426
    %v428 = vpop.xlane.xlu0 %427
    %v429 = vsub.f32 %v414, %v425
    %v430 = vsub.f32 %v419, %v428
    %v431 = vmul.f32 %v429, 1.442695
    %v432 = vpow.pop %v431
    %v433 = vmul.f32 %v430, 1.442695
    %v434 = vpow.pop %v433
    %v435 = vsel %vm422, %v432, 0.0
    %436 = vadd.xlane.f32.xlu0 %v435
    %v437 = vpop.xlane.xlu0 %436
    %v438 = vsel %vm422, %v434, 0.0
    %439 = vadd.xlane.f32.xlu0 %v438
    %v440 = vpop.xlane.xlu0 %439
    %v441 = vrcp.pop %v437
    %v442 = vrcp.pop %v440
    %v443 = vmul.f32 %v432, %v441
    %v444 = vmul.f32 %v434, %v442
    %v446 = vsel %vm422, %v443, 0
    %v449 = vsel %vm422, %v444, 0
    %451 = vmatprep.subr.mxu0 0.0
    %452 = vmatpush1.msra.mxu0 %v326
    %453 = vmatprep.subr.mxu0 0.0
    %454 = vmatpush1.msra.mxu0 %v331
    %455 = vmatprep.subr.mxu0 0.0
    %456 = vmatpush1.msra.mxu0 0.0
    %457 = vmatprep.subr.mxu0 0.0
    %458 = vmatpush1.msra.mxu0 0.0
    %459 = vmatprep.subr.mxu0 0.0
    %460 = vmatpush1.msra.mxu0 0.0
    %461 = vmatprep.subr.mxu0 0.0
    %462 = vmatpush1.msra.mxu0 0.0
    %463 = vmatprep.subr.mxu0 0.0
    %464 = vmatpush1.msra.mxu0 0.0
    %465 = vmatprep.subr.mxu0 0.0
    %466 = vmatpush1.msra.mxu0 0.0
    %467 = vmatprep.subr.mxu0 0.0
    %468 = vmatpush1.msra.mxu0 0.0
    %469 = vmatprep.subr.mxu0 0.0
    %470 = vmatpush1.msra.mxu0 0.0
    %471 = vmatprep.subr.mxu0 0.0
    %472 = vmatpush1.msra.mxu0 0.0
    %473 = vmatprep.subr.mxu0 0.0
    %474 = vmatpush1.msra.mxu0 0.0
    %475 = vmatprep.subr.mxu0 0.0
    %476 = vmatpush1.msra.mxu0 0.0
    %477 = vmatprep.subr.mxu0 0.0
    %478 = vmatpush1.msra.mxu0 0.0
    %479 = vmatprep.subr.mxu0 0.0
    %480 = vmatpush1.msra.mxu0 0.0
    %481 = vmatprep.subr.mxu0 0.0
    %482 = vmatpush1.msra.mxu0 0.0
    %483 = vmatprep.subr.mxu0 0.0
    %484 = vmatpush1.msra.mxu0 0.0
    %485 = vmatprep.subr.mxu0 0.0
    %486 = vmatpush1.msra.mxu0 0.0
    %487 = vmatprep.subr.mxu0 0.0
    %488 = vmatpush1.msra.mxu0 0.0
    %489 = vmatprep.subr.mxu0 0.0
    %490 = vmatpush1.msra.mxu0 0.0
    %491 = vmatprep.subr.mxu0 0.0
    %492 = vmatpush1.msra.mxu0 0.0
    %493 = vmatprep.subr.mxu0 0.0
    %494 = vmatpush1.msra.mxu0 0.0
    %495 = vmatprep.subr.mxu0 0.0
    %496 = vmatpush1.msra.mxu0 0.0
    %497 = vmatprep.subr.mxu0 0.0
    %498 = vmatpush1.msra.mxu0 0.0
    %499 = vmatprep.subr.mxu0 0.0
    %500 = vmatpush1.msra.mxu0 0.0
    %501 = vmatprep.subr.mxu0 0.0
    %502 = vmatpush1.msra.mxu0 0.0
    %503 = vmatprep.subr.mxu0 0.0
    %504 = vmatpush1.msra.mxu0 0.0
    %505 = vmatprep.subr.mxu0 0.0
    %506 = vmatpush1.msra.mxu0 0.0
    %507 = vmatprep.subr.mxu0 0.0
    %508 = vmatpush1.msra.mxu0 0.0
    %509 = vmatprep.subr.mxu0 0.0
    %510 = vmatpush1.msra.mxu0 0.0
    %511 = vmatprep.subr.mxu0 0.0
    %512 = vmatpush1.msra.mxu0 0.0
    %513 = vmatprep.subr.mxu0 0.0
    %514 = vmatpush1.msra.mxu0 0.0
    %515 = vmatprep.mubr.f32.mxu0 0.0
    %516 = vmatmul.mubr.f32.gmra.mrb[0].mxu0 %v446
    %v517 = vpop.f32.mrb[0].mxu0
    %v518 = vadd.f32 0.0, %v517
    %v519 = vpop.f32.mrb[0].mxu0
    %520 = vmatprep.mubr.f32.mxu0 0.0
    %521 = vmatmul.mubr.f32.gmra.mrb[0].mxu0 %v449
    %v522 = vpop.f32.mrb[0].mxu0
    %v523 = vadd.f32 0.0, %v522
    %v524 = vpop.f32.mrb[0].mxu0
    %525 = vdwg.mxu0
    %v526 = vld [vmem:[#allocation9] sm:$0xff]
    %v527 = vld [vmem:[#allocation9 + $0x8] sm:$0xff]
    %v528 = vld [vmem:[#allocation9 + $0x10] sm:$0xff]
    %v529 = vld [vmem:[#allocation9 + $0x18] sm:$0xff]
    %v530 = vld [vmem:[#allocation6 + $0x20] sm:$0xff]
    %v531 = vld [vmem:[#allocation6 + $0x28] sm:$0xff]
    %v532 = vld [vmem:[#allocation6 + $0x30] sm:$0xff]
    %v533 = vld [vmem:[#allocation6 + $0x38] sm:$0xff]
    %v534 = vld [vmem:[#allocation6 + $0xa0] sm:$0xff]
    %v535 = vld [vmem:[#allocation6 + $0xa8] sm:$0xff]
    %v536 = vld [vmem:[#allocation6 + $0xb0] sm:$0xff]
    %v537 = vld [vmem:[#allocation6 + $0xb8] sm:$0xff]
    %v538 = vld [vmem:[#allocation6 + $0x120] sm:$0xff]
    %v539 = vld [vmem:[#allocation6 + $0x128] sm:$0xff]
    %v540 = vld [vmem:[#allocation6 + $0x130] sm:$0xff]
    %v541 = vld [vmem:[#allocation6 + $0x138] sm:$0xff]
    %v542 = vld [vmem:[#allocation8 + $0x1] sm:$0x1]
    %v543 = vld [vmem:[#allocation8 + $0x5] sm:$0x1]
    %v544 = vld [vmem:[#allocation8 + $0x9] sm:$0x1]
    %v545 = vlaneseq
    %v546 = vshrl.u32 %v545, 7
    %v547 = vsub.s32 0, %v546
    %v548 = vrot.slane %v542, %v547
    %549 = vmatprep.subr.mxu0 0.0
    %550 = vmatpush1.xpose.msra.mxu0 %v530
    %551 = vmatprep.subr.mxu0 0.0
    %552 = vmatpush1.xpose.msra.mxu0 %v531
    %553 = vmatprep.subr.mxu0 0.0
    %554 = vmatpush1.xpose.msra.mxu0 %v532
    %555 = vmatprep.subr.mxu0 0.0
    %556 = vmatpush1.xpose.msra.mxu0 %v533
    %557 = vmatprep.subr.mxu0 0.0
    %558 = vmatpush1.xpose.msra.mxu0 0.0
    %559 = vmatprep.subr.mxu0 0.0
    %560 = vmatpush1.xpose.msra.mxu0 0.0
    %561 = vmatprep.subr.mxu0 0.0
    %562 = vmatpush1.xpose.msra.mxu0 0.0
    %563 = vmatprep.subr.mxu0 0.0
    %564 = vmatpush1.xpose.msra.mxu0 0.0
    %565 = vmatprep.subr.mxu0 0.0
    %566 = vmatpush1.xpose.msra.mxu0 0.0
    %567 = vmatprep.subr.mxu0 0.0
    %568 = vmatpush1.xpose.msra.mxu0 0.0
    %569 = vmatprep.subr.mxu0 0.0
    %570 = vmatpush1.xpose.msra.mxu0 0.0
    %571 = vmatprep.subr.mxu0 0.0
    %572 = vmatpush1.xpose.msra.mxu0 0.0
    %573 = vmatprep.subr.mxu0 0.0
    %574 = vmatpush1.xpose.msra.mxu0 0.0
    %575 = vmatprep.subr.mxu0 0.0
    %576 = vmatpush1.xpose.msra.mxu0 0.0
    %577 = vmatprep.subr.mxu0 0.0
    %578 = vmatpush1.xpose.msra.mxu0 0.0
    %579 = vmatprep.subr.mxu0 0.0
    %580 = vmatpush1.xpose.msra.mxu0 0.0
    %581 = vmatprep.subr.mxu0 0.0
    %582 = vmatpush1.xpose.msra.mxu0 0.0
    %583 = vmatprep.subr.mxu0 0.0
    %584 = vmatpush1.xpose.msra.mxu0 0.0
    %585 = vmatprep.subr.mxu0 0.0
    %586 = vmatpush1.xpose.msra.mxu0 0.0
    %587 = vmatprep.subr.mxu0 0.0
    %588 = vmatpush1.xpose.msra.mxu0 0.0
    %589 = vmatprep.subr.mxu0 0.0
    %590 = vmatpush1.xpose.msra.mxu0 0.0
    %591 = vmatprep.subr.mxu0 0.0
    %592 = vmatpush1.xpose.msra.mxu0 0.0
    %593 = vmatprep.subr.mxu0 0.0
    %594 = vmatpush1.xpose.msra.mxu0 0.0
    %595 = vmatprep.subr.mxu0 0.0
    %596 = vmatpush1.xpose.msra.mxu0 0.0
    %597 = vmatprep.subr.mxu0 0.0
    %598 = vmatpush1.xpose.msra.mxu0 0.0
    %599 = vmatprep.subr.mxu0 0.0
    %600 = vmatpush1.xpose.msra.mxu0 0.0
    %601 = vmatprep.subr.mxu0 0.0
    %602 = vmatpush1.xpose.msra.mxu0 0.0
    %603 = vmatprep.subr.mxu0 0.0
    %604 = vmatpush1.xpose.msra.mxu0 0.0
    %605 = vmatprep.subr.mxu0 0.0
    %606 = vmatpush1.xpose.msra.mxu0 0.0
    %607 = vmatprep.subr.mxu0 0.0
    %608 = vmatpush1.xpose.msra.mxu0 0.0
    %609 = vmatprep.subr.mxu0 0.0
    %610 = vmatpush1.xpose.msra.mxu0 0.0
    %611 = vmatprep.subr.mxu0 0.0
    %612 = vmatpush1.xpose.msra.mxu0 0.0
    %613 = vmatprep.mubr.f32.mxu0 0.0
    %614 = vmatmul.mubr.f32.gmra.mrb[0].mxu0 %v80
    %v615 = vpop.f32.mrb[0].mxu0
    %v616 = vadd.f32 %v548, %v615
    %v617 = vpop.f32.mrb[0].mxu0
    %618 = vmatprep.mubr.f32.mxu0 0.0
    %619 = vmatmul.mubr.f32.gmra.mrb[0].mxu0 %v81
    %v620 = vpop.f32.mrb[0].mxu0
    %v621 = vadd.f32 %v548, %v620
    %v622 = vpop.f32.mrb[0].mxu0
    %623 = vdwg.mxu0
    %v624 = vlaneseq
    %v625 = vshrl.u32 %v624, 7
    %v626 = vsub.s32 0, %v625
    %v627 = vrot.slane %v543, %v626
    %628 = vmatprep.subr.mxu0 0.0
    %629 = vmatpush1.xpose.msra.mxu0 %v534
    %630 = vmatprep.subr.mxu0 0.0
    %631 = vmatpush1.xpose.msra.mxu0 %v535
    %632 = vmatprep.subr.mxu0 0.0
    %633 = vmatpush1.xpose.msra.mxu0 %v536
    %634 = vmatprep.subr.mxu0 0.0
    %635 = vmatpush1.xpose.msra.mxu0 %v537
    %636 = vmatprep.subr.mxu0 0.0
    %637 = vmatpush1.xpose.msra.mxu0 0.0
    %638 = vmatprep.subr.mxu0 0.0
    %639 = vmatpush1.xpose.msra.mxu0 0.0
    %640 = vmatprep.subr.mxu0 0.0
    %641 = vmatpush1.xpose.msra.mxu0 0.0
    %642 = vmatprep.subr.mxu0 0.0
    %643 = vmatpush1.xpose.msra.mxu0 0.0
    %644 = vmatprep.subr.mxu0 0.0
    %645 = vmatpush1.xpose.msra.mxu0 0.0
    %646 = vmatprep.subr.mxu0 0.0
    %647 = vmatpush1.xpose.msra.mxu0 0.0
    %648 = vmatprep.subr.mxu0 0.0
    %649 = vmatpush1.xpose.msra.mxu0 0.0
    %650 = vmatprep.subr.mxu0 0.0
    %651 = vmatpush1.xpose.msra.mxu0 0.0
    %652 = vmatprep.subr.mxu0 0.0
    %653 = vmatpush1.xpose.msra.mxu0 0.0
    %654 = vmatprep.subr.mxu0 0.0
    %655 = vmatpush1.xpose.msra.mxu0 0.0
    %656 = vmatprep.subr.mxu0 0.0
    %657 = vmatpush1.xpose.msra.mxu0 0.0
    %658 = vmatprep.subr.mxu0 0.0
    %659 = vmatpush1.xpose.msra.mxu0 0.0
    %660 = vmatprep.subr.mxu0 0.0
    %661 = vmatpush1.xpose.msra.mxu0 0.0
    %662 = vmatprep.subr.mxu0 0.0
    %663 = vmatpush1.xpose.msra.mxu0 0.0
    %664 = vmatprep.subr.mxu0 0.0
    %665 = vmatpush1.xpose.msra.mxu0 0.0
    %666 = vmatprep.subr.mxu0 0.0
    %667 = vmatpush1.xpose.msra.mxu0 0.0
    %668 = vmatprep.subr.mxu0 0.0
    %669 = vmatpush1.xpose.msra.mxu0 0.0
    %670 = vmatprep.subr.mxu0 0.0
    %671 = vmatpush1.xpose.msra.mxu0 0.0
    %672 = vmatprep.subr.mxu0 0.0
    %673 = vmatpush1.xpose.msra.mxu0 0.0
    %674 = vmatprep.subr.mxu0 0.0
    %675 = vmatpush1.xpose.msra.mxu0 0.0
    %676 = vmatprep.subr.mxu0 0.0
    %677 = vmatpush1.xpose.msra.mxu0 0.0
    %678 = vmatprep.subr.mxu0 0.0
    %679 = vmatpush1.xpose.msra.mxu0 0.0
    %680 = vmatprep.subr.mxu0 0.0
    %681 = vmatpush1.xpose.msra.mxu0 0.0
    %682 = vmatprep.subr.mxu0 0.0
    %683 = vmatpush1.xpose.msra.mxu0 0.0
    %684 = vmatprep.subr.mxu0 0.0
    %685 = vmatpush1.xpose.msra.mxu0 0.0
    %686 = vmatprep.subr.mxu0 0.0
    %687 = vmatpush1.xpose.msra.mxu0 0.0
    %688 = vmatprep.subr.mxu0 0.0
    %689 = vmatpush1.xpose.msra.mxu0 0.0
    %690 = vmatprep.subr.mxu0 0.0
    %691 = vmatpush1.xpose.msra.mxu0 0.0
    %692 = vmatprep.mubr.f32.mxu0 0.0
    %693 = vmatmul.mubr.f32.gmra.mrb[0].mxu0 %v80
    %v694 = vpop.f32.mrb[0].mxu0
    %v695 = vadd.f32 %v627, %v694
    %v696 = vpop.f32.mrb[0].mxu0
    %697 = vmatprep.mubr.f32.mxu0 0.0
    %698 = vmatmul.mubr.f32.gmra.mrb[0].mxu0 %v81
    %v699 = vpop.f32.mrb[0].mxu0
    %v700 = vadd.f32 %v627, %v699
    %v701 = vpop.f32.mrb[0].mxu0
    %702 = vdwg.mxu0
    %v703 = vlaneseq
    %v704 = vshrl.u32 %v703, 7
    %v705 = vsub.s32 0, %v704
    %v706 = vrot.slane %v544, %v705
    %707 = vmatprep.subr.mxu0 0.0
    %708 = vmatpush1.xpose.msra.mxu0 %v538
    %709 = vmatprep.subr.mxu0 0.0
    %710 = vmatpush1.xpose.msra.mxu0 %v539
    %711 = vmatprep.subr.mxu0 0.0
    %712 = vmatpush1.xpose.msra.mxu0 %v540
    %713 = vmatprep.subr.mxu0 0.0
    %714 = vmatpush1.xpose.msra.mxu0 %v541
    %715 = vmatprep.subr.mxu0 0.0
    %716 = vmatpush1.xpose.msra.mxu0 0.0
    %717 = vmatprep.subr.mxu0 0.0
    %718 = vmatpush1.xpose.msra.mxu0 0.0
    %719 = vmatprep.subr.mxu0 0.0
    %720 = vmatpush1.xpose.msra.mxu0 0.0
    %721 = vmatprep.subr.mxu0 0.0
    %722 = vmatpush1.xpose.msra.mxu0 0.0
    %723 = vmatprep.subr.mxu0 0.0
    %724 = vmatpush1.xpose.msra.mxu0 0.0
    %725 = vmatprep.subr.mxu0 0.0
    %726 = vmatpush1.xpose.msra.mxu0 0.0
    %727 = vmatprep.subr.mxu0 0.0
    %728 = vmatpush1.xpose.msra.mxu0 0.0
    %729 = vmatprep.subr.mxu0 0.0
    %730 = vmatpush1.xpose.msra.mxu0 0.0
    %731 = vmatprep.subr.mxu0 0.0
    %732 = vmatpush1.xpose.msra.mxu0 0.0
    %733 = vmatprep.subr.mxu0 0.0
    %734 = vmatpush1.xpose.msra.mxu0 0.0
    %735 = vmatprep.subr.mxu0 0.0
    %736 = vmatpush1.xpose.msra.mxu0 0.0
    %737 = vmatprep.subr.mxu0 0.0
    %738 = vmatpush1.xpose.msra.mxu0 0.0
    %739 = vmatprep.subr.mxu0 0.0
    %740 = vmatpush1.xpose.msra.mxu0 0.0
    %741 = vmatprep.subr.mxu0 0.0
    %742 = vmatpush1.xpose.msra.mxu0 0.0
    %743 = vmatprep.subr.mxu0 0.0
    %744 = vmatpush1.xpose.msra.mxu0 0.0
    %745 = vmatprep.subr.mxu0 0.0
    %746 = vmatpush1.xpose.msra.mxu0 0.0
    %747 = vmatprep.subr.mxu0 0.0
    %748 = vmatpush1.xpose.msra.mxu0 0.0
    %749 = vmatprep.subr.mxu0 0.0
    %750 = vmatpush1.xpose.msra.mxu0 0.0
    %751 = vmatprep.subr.mxu0 0.0
    %752 = vmatpush1.xpose.msra.mxu0 0.0
    %753 = vmatprep.subr.mxu0 0.0
    %754 = vmatpush1.xpose.msra.mxu0 0.0
    %755 = vmatprep.subr.mxu0 0.0
    %756 = vmatpush1.xpose.msra.mxu0 0.0
    %757 = vmatprep.subr.mxu0 0.0
    %758 = vmatpush1.xpose.msra.mxu0 0.0
    %759 = vmatprep.subr.mxu0 0.0
    %760 = vmatpush1.xpose.msra.mxu0 0.0
    %761 = vmatprep.subr.mxu0 0.0
    %762 = vmatpush1.xpose.msra.mxu0 0.0
    %763 = vmatprep.subr.mxu0 0.0
    %764 = vmatpush1.xpose.msra.mxu0 0.0
    %765 = vmatprep.subr.mxu0 0.0
    %766 = vmatpush1.xpose.msra.mxu0 0.0
    %767 = vmatprep.subr.mxu0 0.0
    %768 = vmatpush1.xpose.msra.mxu0 0.0
    %769 = vmatprep.subr.mxu0 0.0
    %770 = vmatpush1.xpose.msra.mxu0 0.0
    %771 = vmatprep.mubr.f32.mxu0 0.0
    %772 = vmatmul.mubr.f32.gmra.mrb[0].mxu0 %v80
    %v773 = vpop.f32.mrb[0].mxu0
    %v774 = vadd.f32 %v706, %v773
    %v775 = vpop.f32.mrb[0].mxu0
    %776 = vmatprep.mubr.f32.mxu0 0.0
    %777 = vmatmul.mubr.f32.gmra.mrb[0].mxu0 %v81
    %v778 = vpop.f32.mrb[0].mxu0
    %v779 = vadd.f32 %v706, %v778
    %v780 = vpop.f32.mrb[0].mxu0
    %781 = vdwg.mxu0
    %v783 = vsel %vm334, %v616, 0
    %v786 = vsel %vm334, %v621, 0
    %v789 = vsel %vm334, %v695, 0
    %v792 = vsel %vm334, %v700, 0
    %794 = vmatprep.subr.mxu0 0.0
    %795 = vmatpush1.xpose.msra.mxu0 %v789
    %796 = vmatprep.subr.mxu0 0.0
    %797 = vmatpush1.xpose.msra.mxu0 %v792
    %798 = vmatprep.subr.mxu0 0.0
    %799 = vmatpush1.xpose.msra.mxu0 0.0
    %800 = vmatprep.subr.mxu0 0.0
    %801 = vmatpush1.xpose.msra.mxu0 0.0
    %802 = vmatprep.subr.mxu0 0.0
    %803 = vmatpush1.xpose.msra.mxu0 0.0
    %804 = vmatprep.subr.mxu0 0.0
    %805 = vmatpush1.xpose.msra.mxu0 0.0
    %806 = vmatprep.subr.mxu0 0.0
    %807 = vmatpush1.xpose.msra.mxu0 0.0
    %808 = vmatprep.subr.mxu0 0.0
    %809 = vmatpush1.xpose.msra.mxu0 0.0
    %810 = vmatprep.subr.mxu0 0.0
    %811 = vmatpush1.xpose.msra.mxu0 0.0
    %812 = vmatprep.subr.mxu0 0.0
    %813 = vmatpush1.xpose.msra.mxu0 0.0
    %814 = vmatprep.subr.mxu0 0.0
    %815 = vmatpush1.xpose.msra.mxu0 0.0
    %816 = vmatprep.subr.mxu0 0.0
    %817 = vmatpush1.xpose.msra.mxu0 0.0
    %818 = vmatprep.subr.mxu0 0.0
    %819 = vmatpush1.xpose.msra.mxu0 0.0
    %820 = vmatprep.subr.mxu0 0.0
    %821 = vmatpush1.xpose.msra.mxu0 0.0
    %822 = vmatprep.subr.mxu0 0.0
    %823 = vmatpush1.xpose.msra.mxu0 0.0
    %824 = vmatprep.subr.mxu0 0.0
    %825 = vmatpush1.xpose.msra.mxu0 0.0
    %826 = vmatprep.subr.mxu0 0.0
    %827 = vmatpush1.xpose.msra.mxu0 0.0
    %828 = vmatprep.subr.mxu0 0.0
    %829 = vmatpush1.xpose.msra.mxu0 0.0
    %830 = vmatprep.subr.mxu0 0.0
    %831 = vmatpush1.xpose.msra.mxu0 0.0
    %832 = vmatprep.subr.mxu0 0.0
    %833 = vmatpush1.xpose.msra.mxu0 0.0
    %834 = vmatprep.subr.mxu0 0.0
    %835 = vmatpush1.xpose.msra.mxu0 0.0
    %836 = vmatprep.subr.mxu0 0.0
    %837 = vmatpush1.xpose.msra.mxu0 0.0
    %838 = vmatprep.subr.mxu0 0.0
    %839 = vmatpush1.xpose.msra.mxu0 0.0
    %840 = vmatprep.subr.mxu0 0.0
    %841 = vmatpush1.xpose.msra.mxu0 0.0
    %842 = vmatprep.subr.mxu0 0.0
    %843 = vmatpush1.xpose.msra.mxu0 0.0
    %844 = vmatprep.subr.mxu0 0.0
    %845 = vmatpush1.xpose.msra.mxu0 0.0
    %846 = vmatprep.subr.mxu0 0.0
    %847 = vmatpush1.xpose.msra.mxu0 0.0
    %848 = vmatprep.subr.mxu0 0.0
    %849 = vmatpush1.xpose.msra.mxu0 0.0
    %850 = vmatprep.subr.mxu0 0.0
    %851 = vmatpush1.xpose.msra.mxu0 0.0
    %852 = vmatprep.subr.mxu0 0.0
    %853 = vmatpush1.xpose.msra.mxu0 0.0
    %854 = vmatprep.subr.mxu0 0.0
    %855 = vmatpush1.xpose.msra.mxu0 0.0
    %856 = vmatprep.subr.mxu0 0.0
    %857 = vmatpush1.xpose.msra.mxu0 0.0
    %858 = vmatprep.mubr.f32.mxu0 0.0
    %859 = vmatmul.mubr.f32.gmra.mrb[0].mxu0 %v783
    %v860 = vpop.f32.mrb[0].mxu0
    %v861 = vadd.f32 0.0, %v860
    %v862 = vpop.f32.mrb[0].mxu0
    %863 = vmatprep.mubr.f32.mxu0 0.0
    %864 = vmatmul.mubr.f32.gmra.mrb[0].mxu0 %v786
    %v865 = vpop.f32.mrb[0].mxu0
    %v866 = vadd.f32 0.0, %v865
    %v867 = vpop.f32.mrb[0].mxu0
    %868 = vdwg.mxu0
    %v869 = vsel %vm422, %v861, -inf
    %870 = vmax.xlane.f32.xlu0 %v869
    %v871 = vpop.xlane.xlu0 %870
    %v872 = vsel %vm422, %v866, -inf
    %873 = vmax.xlane.f32.xlu0 %v872
    %v874 = vpop.xlane.xlu0 %873
    %v875 = vsub.f32 %v861, %v871
    %v876 = vsub.f32 %v866, %v874
    %v877 = vmul.f32 %v875, 1.442695
    %v878 = vpow.pop %v877
    %v879 = vmul.f32 %v876, 1.442695
    %v880 = vpow.pop %v879
    %v881 = vsel %vm422, %v878, 0.0
    %882 = vadd.xlane.f32.xlu0 %v881
    %v883 = vpop.xlane.xlu0 %882
    %v884 = vsel %vm422, %v880, 0.0
    %885 = vadd.xlane.f32.xlu0 %v884
    %v886 = vpop.xlane.xlu0 %885
    %v887 = vrcp.pop %v883
    %v888 = vrcp.pop %v886
    %v889 = vmul.f32 %v878, %v887
    %v890 = vmul.f32 %v880, %v888
    %v892 = vsel %vm422, %v889, 0
    %v895 = vsel %vm422, %v890, 0
    %897 = vmatprep.subr.mxu0 0.0
    %898 = vmatpush1.msra.mxu0 %v774
    %899 = vmatprep.subr.mxu0 0.0
    %900 = vmatpush1.msra.mxu0 %v779
    %901 = vmatprep.subr.mxu0 0.0
    %902 = vmatpush1.msra.mxu0 0.0
    %903 = vmatprep.subr.mxu0 0.0
    %904 = vmatpush1.msra.mxu0 0.0
    %905 = vmatprep.subr.mxu0 0.0
    %906 = vmatpush1.msra.mxu0 0.0
    %907 = vmatprep.subr.mxu0 0.0
    %908 = vmatpush1.msra.mxu0 0.0
    %909 = vmatprep.subr.mxu0 0.0
    %910 = vmatpush1.msra.mxu0 0.0
    %911 = vmatprep.subr.mxu0 0.0
    %912 = vmatpush1.msra.mxu0 0.0
    %913 = vmatprep.subr.mxu0 0.0
    %914 = vmatpush1.msra.mxu0 0.0
    %915 = vmatprep.subr.mxu0 0.0
    %916 = vmatpush1.msra.mxu0 0.0
    %917 = vmatprep.subr.mxu0 0.0
    %918 = vmatpush1.msra.mxu0 0.0
    %919 = vmatprep.subr.mxu0 0.0
    %920 = vmatpush1.msra.mxu0 0.0
    %921 = vmatprep.subr.mxu0 0.0
    %922 = vmatpush1.msra.mxu0 0.0
    %923 = vmatprep.subr.mxu0 0.0
    %924 = vmatpush1.msra.mxu0 0.0
    %925 = vmatprep.subr.mxu0 0.0
    %926 = vmatpush1.msra.mxu0 0.0
    %927 = vmatprep.subr.mxu0 0.0
    %928 = vmatpush1.msra.mxu0 0.0
    %929 = vmatprep.subr.mxu0 0.0
    %930 = vmatpush1.msra.mxu0 0.0
    %931 = vmatprep.subr.mxu0 0.0
    %932 = vmatpush1.msra.mxu0 0.0
    %933 = vmatprep.subr.mxu0 0.0
    %934 = vmatpush1.msra.mxu0 0.0
    %935 = vmatprep.subr.mxu0 0.0
    %936 = vmatpush1.msra.mxu0 0.0
    %937 = vmatprep.subr.mxu0 0.0
    %938 = vmatpush1.msra.mxu0 0.0
    %939 = vmatprep.subr.mxu0 0.0
    %940 = vmatpush1.msra.mxu0 0.0
    %941 = vmatprep.subr.mxu0 0.0
    %942 = vmatpush1.msra.mxu0 0.0
    %943 = vmatprep.subr.mxu0 0.0
    %944 = vmatpush1.msra.mxu0 0.0
    %945 = vmatprep.subr.mxu0 0.0
    %946 = vmatpush1.msra.mxu0 0.0
    %947 = vmatprep.subr.mxu0 0.0
    %948 = vmatpush1.msra.mxu0 0.0
    %949 = vmatprep.subr.mxu0 0.0
    %950 = vmatpush1.msra.mxu0 0.0
    %951 = vmatprep.subr.mxu0 0.0
    %952 = vmatpush1.msra.mxu0 0.0
    %953 = vmatprep.subr.mxu0 0.0
    %954 = vmatpush1.msra.mxu0 0.0
    %955 = vmatprep.subr.mxu0 0.0
    %956 = vmatpush1.msra.mxu0 0.0
    %957 = vmatprep.subr.mxu0 0.0
    %958 = vmatpush1.msra.mxu0 0.0
    %959 = vmatprep.subr.mxu0 0.0
    %960 = vmatpush1.msra.mxu0 0.0
    %961 = vmatprep.mubr.f32.mxu0 0.0
    %962 = vmatmul.mubr.f32.gmra.mrb[0].mxu0 %v892
    %v963 = vpop.f32.mrb[0].mxu0
    %v964 = vadd.f32 0.0, %v963
    %v965 = vpop.f32.mrb[0].mxu0
    %966 = vmatprep.mubr.f32.mxu0 0.0
    %967 = vmatmul.mubr.f32.gmra.mrb[0].mxu0 %v895
    %v968 = vpop.f32.mrb[0].mxu0
    %v969 = vadd.f32 0.0, %v968
    %v970 = vpop.f32.mrb[0].mxu0
    %971 = vdwg.mxu0
    %s972 = scalar_lea.vmem [#allocation9], 32
    %v973 = vld [vmem:[%s972] sm:$0xff]
    %v974 = vld [vmem:[%s972 + $0x8] sm:$0xff]
    %v975 = vld [vmem:[%s972 + $0x10] sm:$0xff]
    %v976 = vld [vmem:[%s972 + $0x18] sm:$0xff]
    %v978 = vsel %vm334, %v964, 0
    %v981 = vsel %vm334, %v969, 0
    %983 = vmatprep.subr.mxu0 0.0
    %984 = vmatpush1.msra.mxu0 %v973
    %985 = vmatprep.subr.mxu0 0.0
    %986 = vmatpush1.msra.mxu0 %v974
    %987 = vmatprep.subr.mxu0 0.0
    %988 = vmatpush1.msra.mxu0 %v975
    %989 = vmatprep.subr.mxu0 0.0
    %990 = vmatpush1.msra.mxu0 %v976
    %991 = vmatprep.subr.mxu0 0.0
    %992 = vmatpush1.msra.mxu0 0.0
    %993 = vmatprep.subr.mxu0 0.0
    %994 = vmatpush1.msra.mxu0 0.0
    %995 = vmatprep.subr.mxu0 0.0
    %996 = vmatpush1.msra.mxu0 0.0
    %997 = vmatprep.subr.mxu0 0.0
    %998 = vmatpush1.msra.mxu0 0.0
    %999 = vmatprep.subr.mxu0 0.0
    %1000 = vmatpush1.msra.mxu0 0.0
    %1001 = vmatprep.subr.mxu0 0.0
    %1002 = vmatpush1.msra.mxu0 0.0
    %1003 = vmatprep.subr.mxu0 0.0
    %1004 = vmatpush1.msra.mxu0 0.0
    %1005 = vmatprep.subr.mxu0 0.0
    %1006 = vmatpush1.msra.mxu0 0.0
    %1007 = vmatprep.subr.mxu0 0.0
    %1008 = vmatpush1.msra.mxu0 0.0
    %1009 = vmatprep.subr.mxu0 0.0
    %1010 = vmatpush1.msra.mxu0 0.0
    %1011 = vmatprep.subr.mxu0 0.0
    %1012 = vmatpush1.msra.mxu0 0.0
    %1013 = vmatprep.subr.mxu0 0.0
    %1014 = vmatpush1.msra.mxu0 0.0
    %1015 = vmatprep.subr.mxu0 0.0
    %1016 = vmatpush1.msra.mxu0 0.0
    %1017 = vmatprep.subr.mxu0 0.0
    %1018 = vmatpush1.msra.mxu0 0.0
    %1019 = vmatprep.subr.mxu0 0.0
    %1020 = vmatpush1.msra.mxu0 0.0
    %1021 = vmatprep.subr.mxu0 0.0
    %1022 = vmatpush1.msra.mxu0 0.0
    %1023 = vmatprep.subr.mxu0 0.0
    %1024 = vmatpush1.msra.mxu0 0.0
    %1025 = vmatprep.subr.mxu0 0.0
    %1026 = vmatpush1.msra.mxu0 0.0
    %1027 = vmatprep.subr.mxu0 0.0
    %1028 = vmatpush1.msra.mxu0 0.0
    %1029 = vmatprep.subr.mxu0 0.0
    %1030 = vmatpush1.msra.mxu0 0.0
    %1031 = vmatprep.subr.mxu0 0.0
    %1032 = vmatpush1.msra.mxu0 0.0
    %1033 = vmatprep.subr.mxu0 0.0
    %1034 = vmatpush1.msra.mxu0 0.0
    %1035 = vmatprep.subr.mxu0 0.0
    %1036 = vmatpush1.msra.mxu0 0.0
    %1037 = vmatprep.subr.mxu0 0.0
    %1038 = vmatpush1.msra.mxu0 0.0
    %1039 = vmatprep.subr.mxu0 0.0
    %1040 = vmatpush1.msra.mxu0 0.0
    %1041 = vmatprep.subr.mxu0 0.0
    %1042 = vmatpush1.msra.mxu0 0.0
    %1043 = vmatprep.subr.mxu0 0.0
    %1044 = vmatpush1.msra.mxu0 0.0
    %1045 = vmatprep.subr.mxu0 0.0
    %1046 = vmatpush1.msra.mxu0 0.0
    %1047 = vmatprep.mubr.f32.mxu0 0.0
    %1048 = vmatmul.mubr.f32.gmra.mrb[0].mxu0 %v978
    %v1049 = vpop.f32.mrb[0].mxu0
    %v1050 = vadd.f32 0.0, %v1049
    %v1051 = vpop.f32.mrb[0].mxu0
    %1052 = vmatprep.mubr.f32.mxu0 0.0
    %1053 = vmatmul.mubr.f32.gmra.mrb[0].mxu0 %v981
    %v1054 = vpop.f32.mrb[0].mxu0
    %v1055 = vadd.f32 0.0, %v1054
    %v1056 = vpop.f32.mrb[0].mxu0
    %1057 = vdwg.mxu0
    %v1059 = vsel %vm334, %v518, 0
    %v1062 = vsel %vm334, %v523, 0
    %1064 = vmatprep.subr.mxu0 0.0
    %1065 = vmatpush1.msra.mxu0 %v526
    %1066 = vmatprep.subr.mxu0 0.0
    %1067 = vmatpush1.msra.mxu0 %v527
    %1068 = vmatprep.subr.mxu0 0.0
    %1069 = vmatpush1.msra.mxu0 %v528
    %1070 = vmatprep.subr.mxu0 0.0
    %1071 = vmatpush1.msra.mxu0 %v529
    %1072 = vmatprep.subr.mxu0 0.0
    %1073 = vmatpush1.msra.mxu0 0.0
    %1074 = vmatprep.subr.mxu0 0.0
    %1075 = vmatpush1.msra.mxu0 0.0
    %1076 = vmatprep.subr.mxu0 0.0
    %1077 = vmatpush1.msra.mxu0 0.0
    %1078 = vmatprep.subr.mxu0 0.0
    %1079 = vmatpush1.msra.mxu0 0.0
    %1080 = vmatprep.subr.mxu0 0.0
    %1081 = vmatpush1.msra.mxu0 0.0
    %1082 = vmatprep.subr.mxu0 0.0
    %1083 = vmatpush1.msra.mxu0 0.0
    %1084 = vmatprep.subr.mxu0 0.0
    %1085 = vmatpush1.msra.mxu0 0.0
    %1086 = vmatprep.subr.mxu0 0.0
    %1087 = vmatpush1.msra.mxu0 0.0
    %1088 = vmatprep.subr.mxu0 0.0
    %1089 = vmatpush1.msra.mxu0 0.0
    %1090 = vmatprep.subr.mxu0 0.0
    %1091 = vmatpush1.msra.mxu0 0.0
    %1092 = vmatprep.subr.mxu0 0.0
    %1093 = vmatpush1.msra.mxu0 0.0
    %1094 = vmatprep.subr.mxu0 0.0
    %1095 = vmatpush1.msra.mxu0 0.0
    %1096 = vmatprep.subr.mxu0 0.0
    %1097 = vmatpush1.msra.mxu0 0.0
    %1098 = vmatprep.subr.mxu0 0.0
    %1099 = vmatpush1.msra.mxu0 0.0
    %1100 = vmatprep.subr.mxu0 0.0
    %1101 = vmatpush1.msra.mxu0 0.0
    %1102 = vmatprep.subr.mxu0 0.0
    %1103 = vmatpush1.msra.mxu0 0.0
    %1104 = vmatprep.subr.mxu0 0.0
    %1105 = vmatpush1.msra.mxu0 0.0
    %1106 = vmatprep.subr.mxu0 0.0
    %1107 = vmatpush1.msra.mxu0 0.0
    %1108 = vmatprep.subr.mxu0 0.0
    %1109 = vmatpush1.msra.mxu0 0.0
    %1110 = vmatprep.subr.mxu0 0.0
    %1111 = vmatpush1.msra.mxu0 0.0
    %1112 = vmatprep.subr.mxu0 0.0
    %1113 = vmatpush1.msra.mxu0 0.0
    %1114 = vmatprep.subr.mxu0 0.0
    %1115 = vmatpush1.msra.mxu0 0.0
    %1116 = vmatprep.subr.mxu0 0.0
    %1117 = vmatpush1.msra.mxu0 0.0
    %1118 = vmatprep.subr.mxu0 0.0
    %1119 = vmatpush1.msra.mxu0 0.0
    %1120 = vmatprep.subr.mxu0 0.0
    %1121 = vmatpush1.msra.mxu0 0.0
    %1122 = vmatprep.subr.mxu0 0.0
    %1123 = vmatpush1.msra.mxu0 0.0
    %1124 = vmatprep.subr.mxu0 0.0
    %1125 = vmatpush1.msra.mxu0 0.0
    %1126 = vmatprep.subr.mxu0 0.0
    %1127 = vmatpush1.msra.mxu0 0.0
    %1128 = vmatprep.mubr.f32.mxu0 0.0
    %1129 = vmatmul.mubr.f32.gmra.mrb[0].mxu0 %v1059
    %v1130 = vpop.f32.mrb[0].mxu0
    %v1131 = vadd.f32 %v1050, %v1130
    %v1132 = vpop.f32.mrb[0].mxu0
    %1133 = vmatprep.mubr.f32.mxu0 0.0
    %1134 = vmatmul.mubr.f32.gmra.mrb[0].mxu0 %v1062
    %v1135 = vpop.f32.mrb[0].mxu0
    %v1136 = vadd.f32 %v1055, %v1135
    %v1137 = vpop.f32.mrb[0].mxu0
    %1138 = vdwg.mxu0
    %v1139 = vld [vmem:[#allocation6 + $0x40] sm:$0xff]
    %v1140 = vld [vmem:[#allocation6 + $0x48] sm:$0xff]
    %v1141 = vld [vmem:[#allocation6 + $0x50] sm:$0xff]
    %v1142 = vld [vmem:[#allocation6 + $0x58] sm:$0xff]
    %v1143 = vld [vmem:[#allocation6 + $0xc0] sm:$0xff]
    %v1144 = vld [vmem:[#allocation6 + $0xc8] sm:$0xff]
    %v1145 = vld [vmem:[#allocation6 + $0xd0] sm:$0xff]
    %v1146 = vld [vmem:[#allocation6 + $0xd8] sm:$0xff]
    %v1147 = vld [vmem:[#allocation6 + $0x140] sm:$0xff]
    %v1148 = vld [vmem:[#allocation6 + $0x148] sm:$0xff]
    %v1149 = vld [vmem:[#allocation6 + $0x150] sm:$0xff]
    %v1150 = vld [vmem:[#allocation6 + $0x158] sm:$0xff]
    %v1151 = vld [vmem:[#allocation8 + $0x2] sm:$0x1]
    %v1152 = vld [vmem:[#allocation8 + $0x6] sm:$0x1]
    %v1153 = vld [vmem:[#allocation8 + $0xa] sm:$0x1]
    %v1154 = vlaneseq
    %v1155 = vshrl.u32 %v1154, 7
    %v1156 = vsub.s32 0, %v1155
    %v1157 = vrot.slane %v1151, %v1156
    %1158 = vmatprep.subr.mxu0 0.0
    %1159 = vmatpush1.xpose.msra.mxu0 %v1139
    %1160 = vmatprep.subr.mxu0 0.0
    %1161 = vmatpush1.xpose.msra.mxu0 %v1140
    %1162 = vmatprep.subr.mxu0 0.0
    %1163 = vmatpush1.xpose.msra.mxu0 %v1141
    %1164 = vmatprep.subr.mxu0 0.0
    %1165 = vmatpush1.xpose.msra.mxu0 %v1142
    %1166 = vmatprep.subr.mxu0 0.0
    %1167 = vmatpush1.xpose.msra.mxu0 0.0
    %1168 = vmatprep.subr.mxu0 0.0
    %1169 = vmatpush1.xpose.msra.mxu0 0.0
    %1170 = vmatprep.subr.mxu0 0.0
    %1171 = vmatpush1.xpose.msra.mxu0 0.0
    %1172 = vmatprep.subr.mxu0 0.0
    %1173 = vmatpush1.xpose.msra.mxu0 0.0
    %1174 = vmatprep.subr.mxu0 0.0
    %1175 = vmatpush1.xpose.msra.mxu0 0.0
    %1176 = vmatprep.subr.mxu0 0.0
    %1177 = vmatpush1.xpose.msra.mxu0 0.0
    %1178 = vmatprep.subr.mxu0 0.0
    %1179 = vmatpush1.xpose.msra.mxu0 0.0
    %1180 = vmatprep.subr.mxu0 0.0
    %1181 = vmatpush1.xpose.msra.mxu0 0.0
    %1182 = vmatprep.subr.mxu0 0.0
    %1183 = vmatpush1.xpose.msra.mxu0 0.0
    %1184 = vmatprep.subr.mxu0 0.0
    %1185 = vmatpush1.xpose.msra.mxu0 0.0
    %1186 = vmatprep.subr.mxu0 0.0
    %1187 = vmatpush1.xpose.msra.mxu0 0.0
    %1188 = vmatprep.subr.mxu0 0.0
    %1189 = vmatpush1.xpose.msra.mxu0 0.0
    %1190 = vmatprep.subr.mxu0 0.0
    %1191 = vmatpush1.xpose.msra.mxu0 0.0
    %1192 = vmatprep.subr.mxu0 0.0
    %1193 = vmatpush1.xpose.msra.mxu0 0.0
    %1194 = vmatprep.subr.mxu0 0.0
    %1195 = vmatpush1.xpose.msra.mxu0 0.0
    %1196 = vmatprep.subr.mxu0 0.0
    %1197 = vmatpush1.xpose.msra.mxu0 0.0
    %1198 = vmatprep.subr.mxu0 0.0
    %1199 = vmatpush1.xpose.msra.mxu0 0.0
    %1200 = vmatprep.subr.mxu0 0.0
    %1201 = vmatpush1.xpose.msra.mxu0 0.0
    %1202 = vmatprep.subr.mxu0 0.0
    %1203 = vmatpush1.xpose.msra.mxu0 0.0
    %1204 = vmatprep.subr.mxu0 0.0
    %1205 = vmatpush1.xpose.msra.mxu0 0.0
    %1206 = vmatprep.subr.mxu0 0.0
    %1207 = vmatpush1.xpose.msra.mxu0 0.0
    %1208 = vmatprep.subr.mxu0 0.0
    %1209 = vmatpush1.xpose.msra.mxu0 0.0
    %1210 = vmatprep.subr.mxu0 0.0
    %1211 = vmatpush1.xpose.msra.mxu0 0.0
    %1212 = vmatprep.subr.mxu0 0.0
    %1213 = vmatpush1.xpose.msra.mxu0 0.0
    %1214 = vmatprep.subr.mxu0 0.0
    %1215 = vmatpush1.xpose.msra.mxu0 0.0
    %1216 = vmatprep.subr.mxu0 0.0
    %1217 = vmatpush1.xpose.msra.mxu0 0.0
    %1218 = vmatprep.subr.mxu0 0.0
    %1219 = vmatpush1.xpose.msra.mxu0 0.0
    %1220 = vmatprep.subr.mxu0 0.0
    %1221 = vmatpush1.xpose.msra.mxu0 0.0
    %1222 = vmatprep.mubr.f32.mxu0 0.0
    %1223 = vmatmul.mubr.f32.gmra.mrb[0].mxu0 %v80
    %v1224 = vpop.f32.mrb[0].mxu0
    %v1225 = vadd.f32 %v1157, %v1224
    %v1226 = vpop.f32.mrb[0].mxu0
    %1227 = vmatprep.mubr.f32.mxu0 0.0
    %1228 = vmatmul.mubr.f32.gmra.mrb[0].mxu0 %v81
    %v1229 = vpop.f32.mrb[0].mxu0
    %v1230 = vadd.f32 %v1157, %v1229
    %v1231 = vpop.f32.mrb[0].mxu0
    %1232 = vdwg.mxu0
    %v1233 = vlaneseq
    %v1234 = vshrl.u32 %v1233, 7
    %v1235 = vsub.s32 0, %v1234
    %v1236 = vrot.slane %v1152, %v1235
    %1237 = vmatprep.subr.mxu0 0.0
    %1238 = vmatpush1.xpose.msra.mxu0 %v1143
    %1239 = vmatprep.subr.mxu0 0.0
    %1240 = vmatpush1.xpose.msra.mxu0 %v1144
    %1241 = vmatprep.subr.mxu0 0.0
    %1242 = vmatpush1.xpose.msra.mxu0 %v1145
    %1243 = vmatprep.subr.mxu0 0.0
    %1244 = vmatpush1.xpose.msra.mxu0 %v1146
    %1245 = vmatprep.subr.mxu0 0.0
    %1246 = vmatpush1.xpose.msra.mxu0 0.0
    %1247 = vmatprep.subr.mxu0 0.0
    %1248 = vmatpush1.xpose.msra.mxu0 0.0
    %1249 = vmatprep.subr.mxu0 0.0
    %1250 = vmatpush1.xpose.msra.mxu0 0.0
    %1251 = vmatprep.subr.mxu0 0.0
    %1252 = vmatpush1.xpose.msra.mxu0 0.0
    %1253 = vmatprep.subr.mxu0 0.0
    %1254 = vmatpush1.xpose.msra.mxu0 0.0
    %1255 = vmatprep.subr.mxu0 0.0
    %1256 = vmatpush1.xpose.msra.mxu0 0.0
    %1257 = vmatprep.subr.mxu0 0.0
    %1258 = vmatpush1.xpose.msra.mxu0 0.0
    %1259 = vmatprep.subr.mxu0 0.0
    %1260 = vmatpush1.xpose.msra.mxu0 0.0
    %1261 = vmatprep.subr.mxu0 0.0
    %1262 = vmatpush1.xpose.msra.mxu0 0.0
    %1263 = vmatprep.subr.mxu0 0.0
    %1264 = vmatpush1.xpose.msra.mxu0 0.0
    %1265 = vmatprep.subr.mxu0 0.0
    %1266 = vmatpush1.xpose.msra.mxu0 0.0
    %1267 = vmatprep.subr.mxu0 0.0
    %1268 = vmatpush1.xpose.msra.mxu0 0.0
    %1269 = vmatprep.subr.mxu0 0.0
    %1270 = vmatpush1.xpose.msra.mxu0 0.0
    %1271 = vmatprep.subr.mxu0 0.0
    %1272 = vmatpush1.xpose.msra.mxu0 0.0
    %1273 = vmatprep.subr.mxu0 0.0
    %1274 = vmatpush1.xpose.msra.mxu0 0.0
    %1275 = vmatprep.subr.mxu0 0.0
    %1276 = vmatpush1.xpose.msra.mxu0 0.0
    %1277 = vmatprep.subr.mxu0 0.0
    %1278 = vmatpush1.xpose.msra.mxu0 0.0
    %1279 = vmatprep.subr.mxu0 0.0
    %1280 = vmatpush1.xpose.msra.mxu0 0.0
    %1281 = vmatprep.subr.mxu0 0.0
    %1282 = vmatpush1.xpose.msra.mxu0 0.0
    %1283 = vmatprep.subr.mxu0 0.0
    %1284 = vmatpush1.xpose.msra.mxu0 0.0
    %1285 = vmatprep.subr.mxu0 0.0
    %1286 = vmatpush1.xpose.msra.mxu0 0.0
    %1287 = vmatprep.subr.mxu0 0.0
    %1288 = vmatpush1.xpose.msra.mxu0 0.0
    %1289 = vmatprep.subr.mxu0 0.0
    %1290 = vmatpush1.xpose.msra.mxu0 0.0
    %1291 = vmatprep.subr.mxu0 0.0
    %1292 = vmatpush1.xpose.msra.mxu0 0.0
    %1293 = vmatprep.subr.mxu0 0.0
    %1294 = vmatpush1.xpose.msra.mxu0 0.0
    %1295 = vmatprep.subr.mxu0 0.0
    %1296 = vmatpush1.xpose.msra.mxu0 0.0
    %1297 = vmatprep.subr.mxu0 0.0
    %1298 = vmatpush1.xpose.msra.mxu0 0.0
    %1299 = vmatprep.subr.mxu0 0.0
    %1300 = vmatpush1.xpose.msra.mxu0 0.0
    %1301 = vmatprep.mubr.f32.mxu0 0.0
    %1302 = vmatmul.mubr.f32.gmra.mrb[0].mxu0 %v80
    %v1303 = vpop.f32.mrb[0].mxu0
    %v1304 = vadd.f32 %v1236, %v1303
    %v1305 = vpop.f32.mrb[0].mxu0
    %1306 = vmatprep.mubr.f32.mxu0 0.0
    %1307 = vmatmul.mubr.f32.gmra.mrb[0].mxu0 %v81
    %v1308 = vpop.f32.mrb[0].mxu0
    %v1309 = vadd.f32 %v1236, %v1308
    %v1310 = vpop.f32.mrb[0].mxu0
    %1311 = vdwg.mxu0
    %v1312 = vlaneseq
    %v1313 = vshrl.u32 %v1312, 7
    %v1314 = vsub.s32 0, %v1313
    %v1315 = vrot.slane %v1153, %v1314
    %1316 = vmatprep.subr.mxu0 0.0
    %1317 = vmatpush1.xpose.msra.mxu0 %v1147
    %1318 = vmatprep.subr.mxu0 0.0
    %1319 = vmatpush1.xpose.msra.mxu0 %v1148
    %1320 = vmatprep.subr.mxu0 0.0
    %1321 = vmatpush1.xpose.msra.mxu0 %v1149
    %1322 = vmatprep.subr.mxu0 0.0
    %1323 = vmatpush1.xpose.msra.mxu0 %v1150
    %1324 = vmatprep.subr.mxu0 0.0
    %1325 = vmatpush1.xpose.msra.mxu0 0.0
    %1326 = vmatprep.subr.mxu0 0.0
    %1327 = vmatpush1.xpose.msra.mxu0 0.0
    %1328 = vmatprep.subr.mxu0 0.0
    %1329 = vmatpush1.xpose.msra.mxu0 0.0
    %1330 = vmatprep.subr.mxu0 0.0
    %1331 = vmatpush1.xpose.msra.mxu0 0.0
    %1332 = vmatprep.subr.mxu0 0.0
    %1333 = vmatpush1.xpose.msra.mxu0 0.0
    %1334 = vmatprep.subr.mxu0 0.0
    %1335 = vmatpush1.xpose.msra.mxu0 0.0
    %1336 = vmatprep.subr.mxu0 0.0
    %1337 = vmatpush1.xpose.msra.mxu0 0.0
    %1338 = vmatprep.subr.mxu0 0.0
    %1339 = vmatpush1.xpose.msra.mxu0 0.0
    %1340 = vmatprep.subr.mxu0 0.0
    %1341 = vmatpush1.xpose.msra.mxu0 0.0
    %1342 = vmatprep.subr.mxu0 0.0
    %1343 = vmatpush1.xpose.msra.mxu0 0.0
    %1344 = vmatprep.subr.mxu0 0.0
    %1345 = vmatpush1.xpose.msra.mxu0 0.0
    %1346 = vmatprep.subr.mxu0 0.0
    %1347 = vmatpush1.xpose.msra.mxu0 0.0
    %1348 = vmatprep.subr.mxu0 0.0
    %1349 = vmatpush1.xpose.msra.mxu0 0.0
    %1350 = vmatprep.subr.mxu0 0.0
    %1351 = vmatpush1.xpose.msra.mxu0 0.0
    %1352 = vmatprep.subr.mxu0 0.0
    %1353 = vmatpush1.xpose.msra.mxu0 0.0
    %1354 = vmatprep.subr.mxu0 0.0
    %1355 = vmatpush1.xpose.msra.mxu0 0.0
    %1356 = vmatprep.subr.mxu0 0.0
    %1357 = vmatpush1.xpose.msra.mxu0 0.0
    %1358 = vmatprep.subr.mxu0 0.0
    %1359 = vmatpush1.xpose.msra.mxu0 0.0
    %1360 = vmatprep.subr.mxu0 0.0
    %1361 = vmatpush1.xpose.msra.mxu0 0.0
    %1362 = vmatprep.subr.mxu0 0.0
    %1363 = vmatpush1.xpose.msra.mxu0 0.0
    %1364 = vmatprep.subr.mxu0 0.0
    %1365 = vmatpush1.xpose.msra.mxu0 0.0
    %1366 = vmatprep.subr.mxu0 0.0
    %1367 = vmatpush1.xpose.msra.mxu0 0.0
    %1368 = vmatprep.subr.mxu0 0.0
    %1369 = vmatpush1.xpose.msra.mxu0 0.0
    %1370 = vmatprep.subr.mxu0 0.0
    %1371 = vmatpush1.xpose.msra.mxu0 0.0
    %1372 = vmatprep.subr.mxu0 0.0
    %1373 = vmatpush1.xpose.msra.mxu0 0.0
    %1374 = vmatprep.subr.mxu0 0.0
    %1375 = vmatpush1.xpose.msra.mxu0 0.0
    %1376 = vmatprep.subr.mxu0 0.0
    %1377 = vmatpush1.xpose.msra.mxu0 0.0
    %1378 = vmatprep.subr.mxu0 0.0
    %1379 = vmatpush1.xpose.msra.mxu0 0.0
    %1380 = vmatprep.mubr.f32.mxu0 0.0
    %1381 = vmatmul.mubr.f32.gmra.mrb[0].mxu0 %v80
    %v1382 = vpop.f32.mrb[0].mxu0
    %v1383 = vadd.f32 %v1315, %v1382
    %v1384 = vpop.f32.mrb[0].mxu0
    %1385 = vmatprep.mubr.f32.mxu0 0.0
    %1386 = vmatmul.mubr.f32.gmra.mrb[0].mxu0 %v81
    %v1387 = vpop.f32.mrb[0].mxu0
    %v1388 = vadd.f32 %v1315, %v1387
    %v1389 = vpop.f32.mrb[0].mxu0
    %1390 = vdwg.mxu0
    %v1392 = vsel %vm334, %v1225, 0
    %v1395 = vsel %vm334, %v1230, 0
    %v1398 = vsel %vm334, %v1304, 0
    %v1401 = vsel %vm334, %v1309, 0
    %1403 = vmatprep.subr.mxu0 0.0
    %1404 = vmatpush1.xpose.msra.mxu0 %v1398
    %1405 = vmatprep.subr.mxu0 0.0
    %1406 = vmatpush1.xpose.msra.mxu0 %v1401
    %1407 = vmatprep.subr.mxu0 0.0
    %1408 = vmatpush1.xpose.msra.mxu0 0.0
    %1409 = vmatprep.subr.mxu0 0.0
    %1410 = vmatpush1.xpose.msra.mxu0 0.0
    %1411 = vmatprep.subr.mxu0 0.0
    %1412 = vmatpush1.xpose.msra.mxu0 0.0
    %1413 = vmatprep.subr.mxu0 0.0
    %1414 = vmatpush1.xpose.msra.mxu0 0.0
    %1415 = vmatprep.subr.mxu0 0.0
    %1416 = vmatpush1.xpose.msra.mxu0 0.0
    %1417 = vmatprep.subr.mxu0 0.0
    %1418 = vmatpush1.xpose.msra.mxu0 0.0
    %1419 = vmatprep.subr.mxu0 0.0
    %1420 = vmatpush1.xpose.msra.mxu0 0.0
    %1421 = vmatprep.subr.mxu0 0.0
    %1422 = vmatpush1.xpose.msra.mxu0 0.0
    %1423 = vmatprep.subr.mxu0 0.0
    %1424 = vmatpush1.xpose.msra.mxu0 0.0
    %1425 = vmatprep.subr.mxu0 0.0
    %1426 = vmatpush1.xpose.msra.mxu0 0.0
    %1427 = vmatprep.subr.mxu0 0.0
    %1428 = vmatpush1.xpose.msra.mxu0 0.0
    %1429 = vmatprep.subr.mxu0 0.0
    %1430 = vmatpush1.xpose.msra.mxu0 0.0
    %1431 = vmatprep.subr.mxu0 0.0
    %1432 = vmatpush1.xpose.msra.mxu0 0.0
    %1433 = vmatprep.subr.mxu0 0.0
    %1434 = vmatpush1.xpose.msra.mxu0 0.0
    %1435 = vmatprep.subr.mxu0 0.0
    %1436 = vmatpush1.xpose.msra.mxu0 0.0
    %1437 = vmatprep.subr.mxu0 0.0
    %1438 = vmatpush1.xpose.msra.mxu0 0.0
    %1439 = vmatprep.subr.mxu0 0.0
    %1440 = vmatpush1.xpose.msra.mxu0 0.0
    %1441 = vmatprep.subr.mxu0 0.0
    %1442 = vmatpush1.xpose.msra.mxu0 0.0
    %1443 = vmatprep.subr.mxu0 0.0
    %1444 = vmatpush1.xpose.msra.mxu0 0.0
    %1445 = vmatprep.subr.mxu0 0.0
    %1446 = vmatpush1.xpose.msra.mxu0 0.0
    %1447 = vmatprep.subr.mxu0 0.0
    %1448 = vmatpush1.xpose.msra.mxu0 0.0
    %1449 = vmatprep.subr.mxu0 0.0
    %1450 = vmatpush1.xpose.msra.mxu0 0.0
    %1451 = vmatprep.subr.mxu0 0.0
    %1452 = vmatpush1.xpose.msra.mxu0 0.0
    %1453 = vmatprep.subr.mxu0 0.0
    %1454 = vmatpush1.xpose.msra.mxu0 0.0
    %1455 = vmatprep.subr.mxu0 0.0
    %1456 = vmatpush1.xpose.msra.mxu0 0.0
    %1457 = vmatprep.subr.mxu0 0.0
    %1458 = vmatpush1.xpose.msra.mxu0 0.0
    %1459 = vmatprep.subr.mxu0 0.0
    %1460 = vmatpush1.xpose.msra.mxu0 0.0
    %1461 = vmatprep.subr.mxu0 0.0
    %1462 = vmatpush1.xpose.msra.mxu0 0.0
    %1463 = vmatprep.subr.mxu0 0.0
    %1464 = vmatpush1.xpose.msra.mxu0 0.0
    %1465 = vmatprep.subr.mxu0 0.0
    %1466 = vmatpush1.xpose.msra.mxu0 0.0
    %1467 = vmatprep.mubr.f32.mxu0 0.0
    %1468 = vmatmul.mubr.f32.gmra.mrb[0].mxu0 %v1392
    %v1469 = vpop.f32.mrb[0].mxu0
    %v1470 = vadd.f32 0.0, %v1469
    %v1471 = vpop.f32.mrb[0].mxu0
    %1472 = vmatprep.mubr.f32.mxu0 0.0
    %1473 = vmatmul.mubr.f32.gmra.mrb[0].mxu0 %v1395
    %v1474 = vpop.f32.mrb[0].mxu0
    %v1475 = vadd.f32 0.0, %v1474
    %v1476 = vpop.f32.mrb[0].mxu0
    %1477 = vdwg.mxu0
    %v1478 = vsel %vm422, %v1470, -inf
    %1479 = vmax.xlane.f32.xlu0 %v1478
    %v1480 = vpop.xlane.xlu0 %1479
    %v1481 = vsel %vm422, %v1475, -inf
    %1482 = vmax.xlane.f32.xlu0 %v1481
    %v1483 = vpop.xlane.xlu0 %1482
    %v1484 = vsub.f32 %v1470, %v1480
    %v1485 = vsub.f32 %v1475, %v1483
    %v1486 = vmul.f32 %v1484, 1.442695
    %v1487 = vpow.pop %v1486
    %v1488 = vmul.f32 %v1485, 1.442695
    %v1489 = vpow.pop %v1488
    %v1490 = vsel %vm422, %v1487, 0.0
    %1491 = vadd.xlane.f32.xlu0 %v1490
    %v1492 = vpop.xlane.xlu0 %1491
    %v1493 = vsel %vm422, %v1489, 0.0
    %1494 = vadd.xlane.f32.xlu0 %v1493
    %v1495 = vpop.xlane.xlu0 %1494
    %v1496 = vrcp.pop %v1492
    %v1497 = vrcp.pop %v1495
    %v1498 = vmul.f32 %v1487, %v1496
    %v1499 = vmul.f32 %v1489, %v1497
    %v1501 = vsel %vm422, %v1498, 0
    %v1504 = vsel %vm422, %v1499, 0
    %1506 = vmatprep.subr.mxu0 0.0
    %1507 = vmatpush1.msra.mxu0 %v1383
    %1508 = vmatprep.subr.mxu0 0.0
    %1509 = vmatpush1.msra.mxu0 %v1388
    %1510 = vmatprep.subr.mxu0 0.0
    %1511 = vmatpush1.msra.mxu0 0.0
    %1512 = vmatprep.subr.mxu0 0.0
    %1513 = vmatpush1.msra.mxu0 0.0
    %1514 = vmatprep.subr.mxu0 0.0
    %1515 = vmatpush1.msra.mxu0 0.0
    %1516 = vmatprep.subr.mxu0 0.0
    %1517 = vmatpush1.msra.mxu0 0.0
    %1518 = vmatprep.subr.mxu0 0.0
    %1519 = vmatpush1.msra.mxu0 0.0
    %1520 = vmatprep.subr.mxu0 0.0
    %1521 = vmatpush1.msra.mxu0 0.0
    %1522 = vmatprep.subr.mxu0 0.0
    %1523 = vmatpush1.msra.mxu0 0.0
    %1524 = vmatprep.subr.mxu0 0.0
    %1525 = vmatpush1.msra.mxu0 0.0
    %1526 = vmatprep.subr.mxu0 0.0
    %1527 = vmatpush1.msra.mxu0 0.0
    %1528 = vmatprep.subr.mxu0 0.0
    %1529 = vmatpush1.msra.mxu0 0.0
    %1530 = vmatprep.subr.mxu0 0.0
    %1531 = vmatpush1.msra.mxu0 0.0
    %1532 = vmatprep.subr.mxu0 0.0
    %1533 = vmatpush1.msra.mxu0 0.0
    %1534 = vmatprep.subr.mxu0 0.0
    %1535 = vmatpush1.msra.mxu0 0.0
    %1536 = vmatprep.subr.mxu0 0.0
    %1537 = vmatpush1.msra.mxu0 0.0
    %1538 = vmatprep.subr.mxu0 0.0
    %1539 = vmatpush1.msra.mxu0 0.0
    %1540 = vmatprep.subr.mxu0 0.0
    %1541 = vmatpush1.msra.mxu0 0.0
    %1542 = vmatprep.subr.mxu0 0.0
    %1543 = vmatpush1.msra.mxu0 0.0
    %1544 = vmatprep.subr.mxu0 0.0
    %1545 = vmatpush1.msra.mxu0 0.0
    %1546 = vmatprep.subr.mxu0 0.0
    %1547 = vmatpush1.msra.mxu0 0.0
    %1548 = vmatprep.subr.mxu0 0.0
    %1549 = vmatpush1.msra.mxu0 0.0
    %1550 = vmatprep.subr.mxu0 0.0
    %1551 = vmatpush1.msra.mxu0 0.0
    %1552 = vmatprep.subr.mxu0 0.0
    %1553 = vmatpush1.msra.mxu0 0.0
    %1554 = vmatprep.subr.mxu0 0.0
    %1555 = vmatpush1.msra.mxu0 0.0
    %1556 = vmatprep.subr.mxu0 0.0
    %1557 = vmatpush1.msra.mxu0 0.0
    %1558 = vmatprep.subr.mxu0 0.0
    %1559 = vmatpush1.msra.mxu0 0.0
    %1560 = vmatprep.subr.mxu0 0.0
    %1561 = vmatpush1.msra.mxu0 0.0
    %1562 = vmatprep.subr.mxu0 0.0
    %1563 = vmatpush1.msra.mxu0 0.0
    %1564 = vmatprep.subr.mxu0 0.0
    %1565 = vmatpush1.msra.mxu0 0.0
    %1566 = vmatprep.subr.mxu0 0.0
    %1567 = vmatpush1.msra.mxu0 0.0
    %1568 = vmatprep.subr.mxu0 0.0
    %1569 = vmatpush1.msra.mxu0 0.0
    %1570 = vmatprep.mubr.f32.mxu0 0.0
    %1571 = vmatmul.mubr.f32.gmra.mrb[0].mxu0 %v1501
    %v1572 = vpop.f32.mrb[0].mxu0
    %v1573 = vadd.f32 0.0, %v1572
    %v1574 = vpop.f32.mrb[0].mxu0
    %1575 = vmatprep.mubr.f32.mxu0 0.0
    %1576 = vmatmul.mubr.f32.gmra.mrb[0].mxu0 %v1504
    %v1577 = vpop.f32.mrb[0].mxu0
    %v1578 = vadd.f32 0.0, %v1577
    %v1579 = vpop.f32.mrb[0].mxu0
    %1580 = vdwg.mxu0
    %s1581 = scalar_lea.vmem [#allocation9], 64
    %v1582 = vld [vmem:[%s1581] sm:$0xff]
    %v1583 = vld [vmem:[%s1581 + $0x8] sm:$0xff]
    %v1584 = vld [vmem:[%s1581 + $0x10] sm:$0xff]
    %v1585 = vld [vmem:[%s1581 + $0x18] sm:$0xff]
    %v1587 = vsel %vm334, %v1573, 0
    %v1590 = vsel %vm334, %v1578, 0
    %1592 = vmatprep.subr.mxu0 0.0
    %1593 = vmatpush1.msra.mxu0 %v1582
    %1594 = vmatprep.subr.mxu0 0.0
    %1595 = vmatpush1.msra.mxu0 %v1583
    %1596 = vmatprep.subr.mxu0 0.0
    %1597 = vmatpush1.msra.mxu0 %v1584
    %1598 = vmatprep.subr.mxu0 0.0
    %1599 = vmatpush1.msra.mxu0 %v1585
    %1600 = vmatprep.subr.mxu0 0.0
    %1601 = vmatpush1.msra.mxu0 0.0
    %1602 = vmatprep.subr.mxu0 0.0
    %1603 = vmatpush1.msra.mxu0 0.0
    %1604 = vmatprep.subr.mxu0 0.0
    %1605 = vmatpush1.msra.mxu0 0.0
    %1606 = vmatprep.subr.mxu0 0.0
    %1607 = vmatpush1.msra.mxu0 0.0
    %1608 = vmatprep.subr.mxu0 0.0
    %1609 = vmatpush1.msra.mxu0 0.0
    %1610 = vmatprep.subr.mxu0 0.0
    %1611 = vmatpush1.msra.mxu0 0.0
    %1612 = vmatprep.subr.mxu0 0.0
    %1613 = vmatpush1.msra.mxu0 0.0
    %1614 = vmatprep.subr.mxu0 0.0
    %1615 = vmatpush1.msra.mxu0 0.0
    %1616 = vmatprep.subr.mxu0 0.0
    %1617 = vmatpush1.msra.mxu0 0.0
    %1618 = vmatprep.subr.mxu0 0.0
    %1619 = vmatpush1.msra.mxu0 0.0
    %1620 = vmatprep.subr.mxu0 0.0
    %1621 = vmatpush1.msra.mxu0 0.0
    %1622 = vmatprep.subr.mxu0 0.0
    %1623 = vmatpush1.msra.mxu0 0.0
    %1624 = vmatprep.subr.mxu0 0.0
    %1625 = vmatpush1.msra.mxu0 0.0
    %1626 = vmatprep.subr.mxu0 0.0
    %1627 = vmatpush1.msra.mxu0 0.0
    %1628 = vmatprep.subr.mxu0 0.0
    %1629 = vmatpush1.msra.mxu0 0.0
    %1630 = vmatprep.subr.mxu0 0.0
    %1631 = vmatpush1.msra.mxu0 0.0
    %1632 = vmatprep.subr.mxu0 0.0
    %1633 = vmatpush1.msra.mxu0 0.0
    %1634 = vmatprep.subr.mxu0 0.0
    %1635 = vmatpush1.msra.mxu0 0.0
    %1636 = vmatprep.subr.mxu0 0.0
    %1637 = vmatpush1.msra.mxu0 0.0
    %1638 = vmatprep.subr.mxu0 0.0
    %1639 = vmatpush1.msra.mxu0 0.0
    %1640 = vmatprep.subr.mxu0 0.0
    %1641 = vmatpush1.msra.mxu0 0.0
    %1642 = vmatprep.subr.mxu0 0.0
    %1643 = vmatpush1.msra.mxu0 0.0
    %1644 = vmatprep.subr.mxu0 0.0
    %1645 = vmatpush1.msra.mxu0 0.0
    %1646 = vmatprep.subr.mxu0 0.0
    %1647 = vmatpush1.msra.mxu0 0.0
    %1648 = vmatprep.subr.mxu0 0.0
    %1649 = vmatpush1.msra.mxu0 0.0
    %1650 = vmatprep.subr.mxu0 0.0
    %1651 = vmatpush1.msra.mxu0 0.0
    %1652 = vmatprep.subr.mxu0 0.0
    %1653 = vmatpush1.msra.mxu0 0.0
    %1654 = vmatprep.subr.mxu0 0.0
    %1655 = vmatpush1.msra.mxu0 0.0
    %1656 = vmatprep.mubr.f32.mxu0 0.0
    %1657 = vmatmul.mubr.f32.gmra.mrb[0].mxu0 %v1587
    %v1658 = vpop.f32.mrb[0].mxu0
    %v1659 = vadd.f32 0.0, %v1658
    %v1660 = vpop.f32.mrb[0].mxu0
    %1661 = vmatprep.mubr.f32.mxu0 0.0
    %1662 = vmatmul.mubr.f32.gmra.mrb[0].mxu0 %v1590
    %v1663 = vpop.f32.mrb[0].mxu0
    %v1664 = vadd.f32 0.0, %v1663
    %v1665 = vpop.f32.mrb[0].mxu0
    %1666 = vdwg.mxu0
    %v1667 = vadd.f32 %v1131, %v1659
    %v1668 = vadd.f32 %v1136, %v1664
    %v1669 = vld [vmem:[#allocation6 + $0x60] sm:$0xff]
    %v1670 = vld [vmem:[#allocation6 + $0x68] sm:$0xff]
    %v1671 = vld [vmem:[#allocation6 + $0x70] sm:$0xff]
    %v1672 = vld [vmem:[#allocation6 + $0x78] sm:$0xff]
    %v1673 = vld [vmem:[#allocation6 + $0xe0] sm:$0xff]
    %v1674 = vld [vmem:[#allocation6 + $0xe8] sm:$0xff]
    %v1675 = vld [vmem:[#allocation6 + $0xf0] sm:$0xff]
    %v1676 = vld [vmem:[#allocation6 + $0xf8] sm:$0xff]
    %v1677 = vld [vmem:[#allocation6 + $0x160] sm:$0xff]
    %v1678 = vld [vmem:[#allocation6 + $0x168] sm:$0xff]
    %v1679 = vld [vmem:[#allocation6 + $0x170] sm:$0xff]
    %v1680 = vld [vmem:[#allocation6 + $0x178] sm:$0xff]
    %v1681 = vld [vmem:[#allocation8 + $0x3] sm:$0x1]
    %v1682 = vld [vmem:[#allocation8 + $0x7] sm:$0x1]
    %v1683 = vld [vmem:[#allocation8 + $0xb] sm:$0x1]
    %v1684 = vlaneseq
    %v1685 = vshrl.u32 %v1684, 7
    %v1686 = vsub.s32 0, %v1685
    %v1687 = vrot.slane %v1681, %v1686
    %1688 = vmatprep.subr.mxu0 0.0
    %1689 = vmatpush1.xpose.msra.mxu0 %v1669
    %1690 = vmatprep.subr.mxu0 0.0
    %1691 = vmatpush1.xpose.msra.mxu0 %v1670
    %1692 = vmatprep.subr.mxu0 0.0
    %1693 = vmatpush1.xpose.msra.mxu0 %v1671
    %1694 = vmatprep.subr.mxu0 0.0
    %1695 = vmatpush1.xpose.msra.mxu0 %v1672
    %1696 = vmatprep.subr.mxu0 0.0
    %1697 = vmatpush1.xpose.msra.mxu0 0.0
    %1698 = vmatprep.subr.mxu0 0.0
    %1699 = vmatpush1.xpose.msra.mxu0 0.0
    %1700 = vmatprep.subr.mxu0 0.0
    %1701 = vmatpush1.xpose.msra.mxu0 0.0
    %1702 = vmatprep.subr.mxu0 0.0
    %1703 = vmatpush1.xpose.msra.mxu0 0.0
    %1704 = vmatprep.subr.mxu0 0.0
    %1705 = vmatpush1.xpose.msra.mxu0 0.0
    %1706 = vmatprep.subr.mxu0 0.0
    %1707 = vmatpush1.xpose.msra.mxu0 0.0
    %1708 = vmatprep.subr.mxu0 0.0
    %1709 = vmatpush1.xpose.msra.mxu0 0.0
    %1710 = vmatprep.subr.mxu0 0.0
    %1711 = vmatpush1.xpose.msra.mxu0 0.0
    %1712 = vmatprep.subr.mxu0 0.0
    %1713 = vmatpush1.xpose.msra.mxu0 0.0
    %1714 = vmatprep.subr.mxu0 0.0
    %1715 = vmatpush1.xpose.msra.mxu0 0.0
    %1716 = vmatprep.subr.mxu0 0.0
    %1717 = vmatpush1.xpose.msra.mxu0 0.0
    %1718 = vmatprep.subr.mxu0 0.0
    %1719 = vmatpush1.xpose.msra.mxu0 0.0
    %1720 = vmatprep.subr.mxu0 0.0
    %1721 = vmatpush1.xpose.msra.mxu0 0.0
    %1722 = vmatprep.subr.mxu0 0.0
    %1723 = vmatpush1.xpose.msra.mxu0 0.0
    %1724 = vmatprep.subr.mxu0 0.0
    %1725 = vmatpush1.xpose.msra.mxu0 0.0
    %1726 = vmatprep.subr.mxu0 0.0
    %1727 = vmatpush1.xpose.msra.mxu0 0.0
    %1728 = vmatprep.subr.mxu0 0.0
    %1729 = vmatpush1.xpose.msra.mxu0 0.0
    %1730 = vmatprep.subr.mxu0 0.0
    %1731 = vmatpush1.xpose.msra.mxu0 0.0
    %1732 = vmatprep.subr.mxu0 0.0
    %1733 = vmatpush1.xpose.msra.mxu0 0.0
    %1734 = vmatprep.subr.mxu0 0.0
    %1735 = vmatpush1.xpose.msra.mxu0 0.0
    %1736 = vmatprep.subr.mxu0 0.0
    %1737 = vmatpush1.xpose.msra.mxu0 0.0
    %1738 = vmatprep.subr.mxu0 0.0
    %1739 = vmatpush1.xpose.msra.mxu0 0.0
    %1740 = vmatprep.subr.mxu0 0.0
    %1741 = vmatpush1.xpose.msra.mxu0 0.0
    %1742 = vmatprep.subr.mxu0 0.0
    %1743 = vmatpush1.xpose.msra.mxu0 0.0
    %1744 = vmatprep.subr.mxu0 0.0
    %1745 = vmatpush1.xpose.msra.mxu0 0.0
    %1746 = vmatprep.subr.mxu0 0.0
    %1747 = vmatpush1.xpose.msra.mxu0 0.0
    %1748 = vmatprep.subr.mxu0 0.0
    %1749 = vmatpush1.xpose.msra.mxu0 0.0
    %1750 = vmatprep.subr.mxu0 0.0
    %1751 = vmatpush1.xpose.msra.mxu0 0.0
    %1752 = vmatprep.mubr.f32.mxu0 0.0
    %1753 = vmatmul.mubr.f32.gmra.mrb[0].mxu0 %v80
    %v1754 = vpop.f32.mrb[0].mxu0
    %v1755 = vadd.f32 %v1687, %v1754
    %v1756 = vpop.f32.mrb[0].mxu0
    %1757 = vmatprep.mubr.f32.mxu0 0.0
    %1758 = vmatmul.mubr.f32.gmra.mrb[0].mxu0 %v81
    %v1759 = vpop.f32.mrb[0].mxu0
    %v1760 = vadd.f32 %v1687, %v1759
    %v1761 = vpop.f32.mrb[0].mxu0
    %1762 = vdwg.mxu0
    %v1763 = vlaneseq
    %v1764 = vshrl.u32 %v1763, 7
    %v1765 = vsub.s32 0, %v1764
    %v1766 = vrot.slane %v1682, %v1765
    %1767 = vmatprep.subr.mxu0 0.0
    %1768 = vmatpush1.xpose.msra.mxu0 %v1673
    %1769 = vmatprep.subr.mxu0 0.0
    %1770 = vmatpush1.xpose.msra.mxu0 %v1674
    %1771 = vmatprep.subr.mxu0 0.0
    %1772 = vmatpush1.xpose.msra.mxu0 %v1675
    %1773 = vmatprep.subr.mxu0 0.0
    %1774 = vmatpush1.xpose.msra.mxu0 %v1676
    %1775 = vmatprep.subr.mxu0 0.0
    %1776 = vmatpush1.xpose.msra.mxu0 0.0
    %1777 = vmatprep.subr.mxu0 0.0
    %1778 = vmatpush1.xpose.msra.mxu0 0.0
    %1779 = vmatprep.subr.mxu0 0.0
    %1780 = vmatpush1.xpose.msra.mxu0 0.0
    %1781 = vmatprep.subr.mxu0 0.0
    %1782 = vmatpush1.xpose.msra.mxu0 0.0
    %1783 = vmatprep.subr.mxu0 0.0
    %1784 = vmatpush1.xpose.msra.mxu0 0.0
    %1785 = vmatprep.subr.mxu0 0.0
    %1786 = vmatpush1.xpose.msra.mxu0 0.0
    %1787 = vmatprep.subr.mxu0 0.0
    %1788 = vmatpush1.xpose.msra.mxu0 0.0
    %1789 = vmatprep.subr.mxu0 0.0
    %1790 = vmatpush1.xpose.msra.mxu0 0.0
    %1791 = vmatprep.subr.mxu0 0.0
    %1792 = vmatpush1.xpose.msra.mxu0 0.0
    %1793 = vmatprep.subr.mxu0 0.0
    %1794 = vmatpush1.xpose.msra.mxu0 0.0
    %1795 = vmatprep.subr.mxu0 0.0
    %1796 = vmatpush1.xpose.msra.mxu0 0.0
    %1797 = vmatprep.subr.mxu0 0.0
    %1798 = vmatpush1.xpose.msra.mxu0 0.0
    %1799 = vmatprep.subr.mxu0 0.0
    %1800 = vmatpush1.xpose.msra.mxu0 0.0
    %1801 = vmatprep.subr.mxu0 0.0
    %1802 = vmatpush1.xpose.msra.mxu0 0.0
    %1803 = vmatprep.subr.mxu0 0.0
    %1804 = vmatpush1.xpose.msra.mxu0 0.0
    %1805 = vmatprep.subr.mxu0 0.0
    %1806 = vmatpush1.xpose.msra.mxu0 0.0
    %1807 = vmatprep.subr.mxu0 0.0
    %1808 = vmatpush1.xpose.msra.mxu0 0.0
    %1809 = vmatprep.subr.mxu0 0.0
    %1810 = vmatpush1.xpose.msra.mxu0 0.0
    %1811 = vmatprep.subr.mxu0 0.0
    %1812 = vmatpush1.xpose.msra.mxu0 0.0
    %1813 = vmatprep.subr.mxu0 0.0
    %1814 = vmatpush1.xpose.msra.mxu0 0.0
    %1815 = vmatprep.subr.mxu0 0.0
    %1816 = vmatpush1.xpose.msra.mxu0 0.0
    %1817 = vmatprep.subr.mxu0 0.0
    %1818 = vmatpush1.xpose.msra.mxu0 0.0
    %1819 = vmatprep.subr.mxu0 0.0
    %1820 = vmatpush1.xpose.msra.mxu0 0.0
    %1821 = vmatprep.subr.mxu0 0.0
    %1822 = vmatpush1.xpose.msra.mxu0 0.0
    %1823 = vmatprep.subr.mxu0 0.0
    %1824 = vmatpush1.xpose.msra.mxu0 0.0
    %1825 = vmatprep.subr.mxu0 0.0
    %1826 = vmatpush1.xpose.msra.mxu0 0.0
    %1827 = vmatprep.subr.mxu0 0.0
    %1828 = vmatpush1.xpose.msra.mxu0 0.0
    %1829 = vmatprep.subr.mxu0 0.0
    %1830 = vmatpush1.xpose.msra.mxu0 0.0
    %1831 = vmatprep.mubr.f32.mxu0 0.0
    %1832 = vmatmul.mubr.f32.gmra.mrb[0].mxu0 %v80
    %v1833 = vpop.f32.mrb[0].mxu0
    %v1834 = vadd.f32 %v1766, %v1833
    %v1835 = vpop.f32.mrb[0].mxu0
    %1836 = vmatprep.mubr.f32.mxu0 0.0
    %1837 = vmatmul.mubr.f32.gmra.mrb[0].mxu0 %v81
    %v1838 = vpop.f32.mrb[0].mxu0
    %v1839 = vadd.f32 %v1766, %v1838
    %v1840 = vpop.f32.mrb[0].mxu0
    %1841 = vdwg.mxu0
    %v1842 = vlaneseq
    %v1843 = vshrl.u32 %v1842, 7
    %v1844 = vsub.s32 0, %v1843
    %v1845 = vrot.slane %v1683, %v1844
    %1846 = vmatprep.subr.mxu0 0.0
    %1847 = vmatpush1.xpose.msra.mxu0 %v1677
    %1848 = vmatprep.subr.mxu0 0.0
    %1849 = vmatpush1.xpose.msra.mxu0 %v1678
    %1850 = vmatprep.subr.mxu0 0.0
    %1851 = vmatpush1.xpose.msra.mxu0 %v1679
    %1852 = vmatprep.subr.mxu0 0.0
    %1853 = vmatpush1.xpose.msra.mxu0 %v1680
    %1854 = vmatprep.subr.mxu0 0.0
    %1855 = vmatpush1.xpose.msra.mxu0 0.0
    %1856 = vmatprep.subr.mxu0 0.0
    %1857 = vmatpush1.xpose.msra.mxu0 0.0
    %1858 = vmatprep.subr.mxu0 0.0
    %1859 = vmatpush1.xpose.msra.mxu0 0.0
    %1860 = vmatprep.subr.mxu0 0.0
    %1861 = vmatpush1.xpose.msra.mxu0 0.0
    %1862 = vmatprep.subr.mxu0 0.0
    %1863 = vmatpush1.xpose.msra.mxu0 0.0
    %1864 = vmatprep.subr.mxu0 0.0
    %1865 = vmatpush1.xpose.msra.mxu0 0.0
    %1866 = vmatprep.subr.mxu0 0.0
    %1867 = vmatpush1.xpose.msra.mxu0 0.0
    %1868 = vmatprep.subr.mxu0 0.0
    %1869 = vmatpush1.xpose.msra.mxu0 0.0
    %1870 = vmatprep.subr.mxu0 0.0
    %1871 = vmatpush1.xpose.msra.mxu0 0.0
    %1872 = vmatprep.subr.mxu0 0.0
    %1873 = vmatpush1.xpose.msra.mxu0 0.0
    %1874 = vmatprep.subr.mxu0 0.0
    %1875 = vmatpush1.xpose.msra.mxu0 0.0
    %1876 = vmatprep.subr.mxu0 0.0
    %1877 = vmatpush1.xpose.msra.mxu0 0.0
    %1878 = vmatprep.subr.mxu0 0.0
    %1879 = vmatpush1.xpose.msra.mxu0 0.0
    %1880 = vmatprep.subr.mxu0 0.0
    %1881 = vmatpush1.xpose.msra.mxu0 0.0
    %1882 = vmatprep.subr.mxu0 0.0
    %1883 = vmatpush1.xpose.msra.mxu0 0.0
    %1884 = vmatprep.subr.mxu0 0.0
    %1885 = vmatpush1.xpose.msra.mxu0 0.0
    %1886 = vmatprep.subr.mxu0 0.0
    %1887 = vmatpush1.xpose.msra.mxu0 0.0
    %1888 = vmatprep.subr.mxu0 0.0
    %1889 = vmatpush1.xpose.msra.mxu0 0.0
    %1890 = vmatprep.subr.mxu0 0.0
    %1891 = vmatpush1.xpose.msra.mxu0 0.0
    %1892 = vmatprep.subr.mxu0 0.0
    %1893 = vmatpush1.xpose.msra.mxu0 0.0
    %1894 = vmatprep.subr.mxu0 0.0
    %1895 = vmatpush1.xpose.msra.mxu0 0.0
    %1896 = vmatprep.subr.mxu0 0.0
    %1897 = vmatpush1.xpose.msra.mxu0 0.0
    %1898 = vmatprep.subr.mxu0 0.0
    %1899 = vmatpush1.xpose.msra.mxu0 0.0
    %1900 = vmatprep.subr.mxu0 0.0
    %1901 = vmatpush1.xpose.msra.mxu0 0.0
    %1902 = vmatprep.subr.mxu0 0.0
    %1903 = vmatpush1.xpose.msra.mxu0 0.0
    %1904 = vmatprep.subr.mxu0 0.0
    %1905 = vmatpush1.xpose.msra.mxu0 0.0
    %1906 = vmatprep.subr.mxu0 0.0
    %1907 = vmatpush1.xpose.msra.mxu0 0.0
    %1908 = vmatprep.subr.mxu0 0.0
    %1909 = vmatpush1.xpose.msra.mxu0 0.0
    %1910 = vmatprep.mubr.f32.mxu0 0.0
    %1911 = vmatmul.mubr.f32.gmra.mrb[0].mxu0 %v80
    %v1912 = vpop.f32.mrb[0].mxu0
    %v1913 = vadd.f32 %v1845, %v1912
    %v1914 = vpop.f32.mrb[0].mxu0
    %1915 = vmatprep.mubr.f32.mxu0 0.0
    %1916 = vmatmul.mubr.f32.gmra.mrb[0].mxu0 %v81
    %v1917 = vpop.f32.mrb[0].mxu0
    %v1918 = vadd.f32 %v1845, %v1917
    %v1919 = vpop.f32.mrb[0].mxu0
    %1920 = vdwg.mxu0
    %v1922 = vsel %vm334, %v1755, 0
    %v1925 = vsel %vm334, %v1760, 0
    %v1928 = vsel %vm334, %v1834, 0
    %v1931 = vsel %vm334, %v1839, 0
    %1933 = vmatprep.subr.mxu0 0.0
    %1934 = vmatpush1.xpose.msra.mxu0 %v1928
    %1935 = vmatprep.subr.mxu0 0.0
    %1936 = vmatpush1.xpose.msra.mxu0 %v1931
    %1937 = vmatprep.subr.mxu0 0.0
    %1938 = vmatpush1.xpose.msra.mxu0 0.0
    %1939 = vmatprep.subr.mxu0 0.0
    %1940 = vmatpush1.xpose.msra.mxu0 0.0
    %1941 = vmatprep.subr.mxu0 0.0
    %1942 = vmatpush1.xpose.msra.mxu0 0.0
    %1943 = vmatprep.subr.mxu0 0.0
    %1944 = vmatpush1.xpose.msra.mxu0 0.0
    %1945 = vmatprep.subr.mxu0 0.0
    %1946 = vmatpush1.xpose.msra.mxu0 0.0
    %1947 = vmatprep.subr.mxu0 0.0
    %1948 = vmatpush1.xpose.msra.mxu0 0.0
    %1949 = vmatprep.subr.mxu0 0.0
    %1950 = vmatpush1.xpose.msra.mxu0 0.0
    %1951 = vmatprep.subr.mxu0 0.0
    %1952 = vmatpush1.xpose.msra.mxu0 0.0
    %1953 = vmatprep.subr.mxu0 0.0
    %1954 = vmatpush1.xpose.msra.mxu0 0.0
    %1955 = vmatprep.subr.mxu0 0.0
    %1956 = vmatpush1.xpose.msra.mxu0 0.0
    %1957 = vmatprep.subr.mxu0 0.0
    %1958 = vmatpush1.xpose.msra.mxu0 0.0
    %1959 = vmatprep.subr.mxu0 0.0
    %1960 = vmatpush1.xpose.msra.mxu0 0.0
    %1961 = vmatprep.subr.mxu0 0.0
    %1962 = vmatpush1.xpose.msra.mxu0 0.0
    %1963 = vmatprep.subr.mxu0 0.0
    %1964 = vmatpush1.xpose.msra.mxu0 0.0
    %1965 = vmatprep.subr.mxu0 0.0
    %1966 = vmatpush1.xpose.msra.mxu0 0.0
    %1967 = vmatprep.subr.mxu0 0.0
    %1968 = vmatpush1.xpose.msra.mxu0 0.0
    %1969 = vmatprep.subr.mxu0 0.0
    %1970 = vmatpush1.xpose.msra.mxu0 0.0
    %1971 = vmatprep.subr.mxu0 0.0
    %1972 = vmatpush1.xpose.msra.mxu0 0.0
    %1973 = vmatprep.subr.mxu0 0.0
    %1974 = vmatpush1.xpose.msra.mxu0 0.0
    %1975 = vmatprep.subr.mxu0 0.0
    %1976 = vmatpush1.xpose.msra.mxu0 0.0
    %1977 = vmatprep.subr.mxu0 0.0
    %1978 = vmatpush1.xpose.msra.mxu0 0.0
    %1979 = vmatprep.subr.mxu0 0.0
    %1980 = vmatpush1.xpose.msra.mxu0 0.0
    %1981 = vmatprep.subr.mxu0 0.0
    %1982 = vmatpush1.xpose.msra.mxu0 0.0
    %1983 = vmatprep.subr.mxu0 0.0
    %1984 = vmatpush1.xpose.msra.mxu0 0.0
    %1985 = vmatprep.subr.mxu0 0.0
    %1986 = vmatpush1.xpose.msra.mxu0 0.0
    %1987 = vmatprep.subr.mxu0 0.0
    %1988 = vmatpush1.xpose.msra.mxu0 0.0
    %1989 = vmatprep.subr.mxu0 0.0
    %1990 = vmatpush1.xpose.msra.mxu0 0.0
    %1991 = vmatprep.subr.mxu0 0.0
    %1992 = vmatpush1.xpose.msra.mxu0 0.0
    %1993 = vmatprep.subr.mxu0 0.0
    %1994 = vmatpush1.xpose.msra.mxu0 0.0
    %1995 = vmatprep.subr.mxu0 0.0
    %1996 = vmatpush1.xpose.msra.mxu0 0.0
    %1997 = vmatprep.mubr.f32.mxu0 0.0
    %1998 = vmatmul.mubr.f32.gmra.mrb[0].mxu0 %v1922
    %v1999 = vpop.f32.mrb[0].mxu0
    %v2000 = vadd.f32 0.0, %v1999
    %v2001 = vpop.f32.mrb[0].mxu0
    %2002 = vmatprep.mubr.f32.mxu0 0.0
    %2003 = vmatmul.mubr.f32.gmra.mrb[0].mxu0 %v1925
    %v2004 = vpop.f32.mrb[0].mxu0
    %v2005 = vadd.f32 0.0, %v2004
    %v2006 = vpop.f32.mrb[0].mxu0
    %2007 = vdwg.mxu0
    %v2008 = vsel %vm422, %v2000, -inf
    %2009 = vmax.xlane.f32.xlu0 %v2008
    %v2010 = vpop.xlane.xlu0 %2009
    %v2011 = vsel %vm422, %v2005, -inf
    %2012 = vmax.xlane.f32.xlu0 %v2011
    %v2013 = vpop.xlane.xlu0 %2012
    %v2014 = vsub.f32 %v2000, %v2010
    %v2015 = vsub.f32 %v2005, %v2013
    %v2016 = vmul.f32 %v2014, 1.442695
    %v2017 = vpow.pop %v2016
    %v2018 = vmul.f32 %v2015, 1.442695
    %v2019 = vpow.pop %v2018
    %v2020 = vsel %vm422, %v2017, 0.0
    %2021 = vadd.xlane.f32.xlu0 %v2020
    %v2022 = vpop.xlane.xlu0 %2021
    %v2023 = vsel %vm422, %v2019, 0.0
    %2024 = vadd.xlane.f32.xlu0 %v2023
    %v2025 = vpop.xlane.xlu0 %2024
    %v2026 = vrcp.pop %v2022
    %v2027 = vrcp.pop %v2025
    %v2028 = vmul.f32 %v2017, %v2026
    %v2029 = vmul.f32 %v2019, %v2027
    %v2031 = vsel %vm422, %v2028, 0
    %v2034 = vsel %vm422, %v2029, 0
    %2036 = vmatprep.subr.mxu0 0.0
    %2037 = vmatpush1.msra.mxu0 %v1913
    %2038 = vmatprep.subr.mxu0 0.0
    %2039 = vmatpush1.msra.mxu0 %v1918
    %2040 = vmatprep.subr.mxu0 0.0
    %2041 = vmatpush1.msra.mxu0 0.0
    %2042 = vmatprep.subr.mxu0 0.0
    %2043 = vmatpush1.msra.mxu0 0.0
    %2044 = vmatprep.subr.mxu0 0.0
    %2045 = vmatpush1.msra.mxu0 0.0
    %2046 = vmatprep.subr.mxu0 0.0
    %2047 = vmatpush1.msra.mxu0 0.0
    %2048 = vmatprep.subr.mxu0 0.0
    %2049 = vmatpush1.msra.mxu0 0.0
    %2050 = vmatprep.subr.mxu0 0.0
    %2051 = vmatpush1.msra.mxu0 0.0
    %2052 = vmatprep.subr.mxu0 0.0
    %2053 = vmatpush1.msra.mxu0 0.0
    %2054 = vmatprep.subr.mxu0 0.0
    %2055 = vmatpush1.msra.mxu0 0.0
    %2056 = vmatprep.subr.mxu0 0.0
    %2057 = vmatpush1.msra.mxu0 0.0
    %2058 = vmatprep.subr.mxu0 0.0
    %2059 = vmatpush1.msra.mxu0 0.0
    %2060 = vmatprep.subr.mxu0 0.0
    %2061 = vmatpush1.msra.mxu0 0.0
    %2062 = vmatprep.subr.mxu0 0.0
    %2063 = vmatpush1.msra.mxu0 0.0
    %2064 = vmatprep.subr.mxu0 0.0
    %2065 = vmatpush1.msra.mxu0 0.0
    %2066 = vmatprep.subr.mxu0 0.0
    %2067 = vmatpush1.msra.mxu0 0.0
    %2068 = vmatprep.subr.mxu0 0.0
    %2069 = vmatpush1.msra.mxu0 0.0
    %2070 = vmatprep.subr.mxu0 0.0
    %2071 = vmatpush1.msra.mxu0 0.0
    %2072 = vmatprep.subr.mxu0 0.0
    %2073 = vmatpush1.msra.mxu0 0.0
    %2074 = vmatprep.subr.mxu0 0.0
    %2075 = vmatpush1.msra.mxu0 0.0
    %2076 = vmatprep.subr.mxu0 0.0
    %2077 = vmatpush1.msra.mxu0 0.0
    %2078 = vmatprep.subr.mxu0 0.0
    %2079 = vmatpush1.msra.mxu0 0.0
    %2080 = vmatprep.subr.mxu0 0.0
    %2081 = vmatpush1.msra.mxu0 0.0
    %2082 = vmatprep.subr.mxu0 0.0
    %2083 = vmatpush1.msra.mxu0 0.0
    %2084 = vmatprep.subr.mxu0 0.0
    %2085 = vmatpush1.msra.mxu0 0.0
    %2086 = vmatprep.subr.mxu0 0.0
    %2087 = vmatpush1.msra.mxu0 0.0
    %2088 = vmatprep.subr.mxu0 0.0
    %2089 = vmatpush1.msra.mxu0 0.0
    %2090 = vmatprep.subr.mxu0 0.0
    %2091 = vmatpush1.msra.mxu0 0.0
    %2092 = vmatprep.subr.mxu0 0.0
    %2093 = vmatpush1.msra.mxu0 0.0
    %2094 = vmatprep.subr.mxu0 0.0
    %2095 = vmatpush1.msra.mxu0 0.0
    %2096 = vmatprep.subr.mxu0 0.0
    %2097 = vmatpush1.msra.mxu0 0.0
    %2098 = vmatprep.subr.mxu0 0.0
    %2099 = vmatpush1.msra.mxu0 0.0
    %2100 = vmatprep.mubr.f32.mxu0 0.0
    %2101 = vmatmul.mubr.f32.gmra.mrb[0].mxu0 %v2031
    %v2102 = vpop.f32.mrb[0].mxu0
    %v2103 = vadd.f32 0.0, %v2102
    %v2104 = vpop.f32.mrb[0].mxu0
    %2105 = vmatprep.mubr.f32.mxu0 0.0
    %2106 = vmatmul.mubr.f32.gmra.mrb[0].mxu0 %v2034
    %v2107 = vpop.f32.mrb[0].mxu0
    %v2108 = vadd.f32 0.0, %v2107
    %v2109 = vpop.f32.mrb[0].mxu0
    %2110 = vdwg.mxu0
    %s2111 = scalar_lea.vmem [#allocation9], 96
    %v2112 = vld [vmem:[%s2111] sm:$0xff]
    %v2113 = vld [vmem:[%s2111 + $0x8] sm:$0xff]
    %v2114 = vld [vmem:[%s2111 + $0x10] sm:$0xff]
    %v2115 = vld [vmem:[%s2111 + $0x18] sm:$0xff]
    %v2117 = vsel %vm334, %v2103, 0
    %v2120 = vsel %vm334, %v2108, 0
    %2122 = vmatprep.subr.mxu0 0.0
    %2123 = vmatpush1.msra.mxu0 %v2112
    %2124 = vmatprep.subr.mxu0 0.0
    %2125 = vmatpush1.msra.mxu0 %v2113
    %2126 = vmatprep.subr.mxu0 0.0
    %2127 = vmatpush1.msra.mxu0 %v2114
    %2128 = vmatprep.subr.mxu0 0.0
    %2129 = vmatpush1.msra.mxu0 %v2115
    %2130 = vmatprep.subr.mxu0 0.0
    %2131 = vmatpush1.msra.mxu0 0.0
    %2132 = vmatprep.subr.mxu0 0.0
    %2133 = vmatpush1.msra.mxu0 0.0
    %2134 = vmatprep.subr.mxu0 0.0
    %2135 = vmatpush1.msra.mxu0 0.0
    %2136 = vmatprep.subr.mxu0 0.0
    %2137 = vmatpush1.msra.mxu0 0.0
    %2138 = vmatprep.subr.mxu0 0.0
    %2139 = vmatpush1.msra.mxu0 0.0
    %2140 = vmatprep.subr.mxu0 0.0
    %2141 = vmatpush1.msra.mxu0 0.0
    %2142 = vmatprep.subr.mxu0 0.0
    %2143 = vmatpush1.msra.mxu0 0.0
    %2144 = vmatprep.subr.mxu0 0.0
    %2145 = vmatpush1.msra.mxu0 0.0
    %2146 = vmatprep.subr.mxu0 0.0
    %2147 = vmatpush1.msra.mxu0 0.0
    %2148 = vmatprep.subr.mxu0 0.0
    %2149 = vmatpush1.msra.mxu0 0.0
    %2150 = vmatprep.subr.mxu0 0.0
    %2151 = vmatpush1.msra.mxu0 0.0
    %2152 = vmatprep.subr.mxu0 0.0
    %2153 = vmatpush1.msra.mxu0 0.0
    %2154 = vmatprep.subr.mxu0 0.0
    %2155 = vmatpush1.msra.mxu0 0.0
    %2156 = vmatprep.subr.mxu0 0.0
    %2157 = vmatpush1.msra.mxu0 0.0
    %2158 = vmatprep.subr.mxu0 0.0
    %2159 = vmatpush1.msra.mxu0 0.0
    %2160 = vmatprep.subr.mxu0 0.0
    %2161 = vmatpush1.msra.mxu0 0.0
    %2162 = vmatprep.subr.mxu0 0.0
    %2163 = vmatpush1.msra.mxu0 0.0
    %2164 = vmatprep.subr.mxu0 0.0
    %2165 = vmatpush1.msra.mxu0 0.0
    %2166 = vmatprep.subr.mxu0 0.0
    %2167 = vmatpush1.msra.mxu0 0.0
    %2168 = vmatprep.subr.mxu0 0.0
    %2169 = vmatpush1.msra.mxu0 0.0
    %2170 = vmatprep.subr.mxu0 0.0
    %2171 = vmatpush1.msra.mxu0 0.0
    %2172 = vmatprep.subr.mxu0 0.0
    %2173 = vmatpush1.msra.mxu0 0.0
    %2174 = vmatprep.subr.mxu0 0.0
    %2175 = vmatpush1.msra.mxu0 0.0
    %2176 = vmatprep.subr.mxu0 0.0
    %2177 = vmatpush1.msra.mxu0 0.0
    %2178 = vmatprep.subr.mxu0 0.0
    %2179 = vmatpush1.msra.mxu0 0.0
    %2180 = vmatprep.subr.mxu0 0.0
    %2181 = vmatpush1.msra.mxu0 0.0
    %2182 = vmatprep.subr.mxu0 0.0
    %2183 = vmatpush1.msra.mxu0 0.0
    %2184 = vmatprep.subr.mxu0 0.0
    %2185 = vmatpush1.msra.mxu0 0.0
    %2186 = vmatprep.mubr.f32.mxu0 0.0
    %2187 = vmatmul.mubr.f32.gmra.mrb[0].mxu0 %v2117
    %v2188 = vpop.f32.mrb[0].mxu0
    %v2189 = vadd.f32 0.0, %v2188
    %v2190 = vpop.f32.mrb[0].mxu0
    %2191 = vmatprep.mubr.f32.mxu0 0.0
    %2192 = vmatmul.mubr.f32.gmra.mrb[0].mxu0 %v2120
    %v2193 = vpop.f32.mrb[0].mxu0
    %v2194 = vadd.f32 0.0, %v2193
    %v2195 = vpop.f32.mrb[0].mxu0
    %2196 = vdwg.mxu0
    %v2197 = vadd.f32 %v1667, %v2189
    %v2198 = vadd.f32 %v1668, %v2194
    %v2199 = vld [vmem:[%s5] sm:$0x1]
    %v2201 = vlaneseq
    %v2202 = vshrl.u32 %v2201, 7
    %v2203 = vsub.s32 0, %v2202
    %v2204 = vrot.slane %v2199, %v2203
    %v2206 = vadd.f32 %v2197, %v2204
    %v2207 = vadd.f32 %v2198, %v2204
    %v2208 = vmax.f32 %v2206, %v2207
    %v2209 = vrot.slane %v2208, 4
    %v2210 = vmax.f32 %v2208, %v2209
    %v2211 = vrot.slane %v2210, 2
    %v2212 = vmax.f32 %v2210, %v2211
    %v2213 = vrot.slane %v2212, 1
    %v2214 = vmax.f32 %v2212, %v2213
    %2215 = vst [vmem:[#allocation11] sm:$0x1] %v2214
    // Predicated region
    $region42: #{tpu_custom_call.1} parent=1 // pred_check
      _
    $region43: #{tpu_custom_call.1} parent=1 // pred_check_branch
      %2217 = sbr.rel (0) target = $region45
    $region44: #{tpu_custom_call.1} parent=1 // pred_region
      %s2219 = ssub.s32 16, 16
      %2220 = vsyncadd [#allocation5], %s2219
      %s2222 = sshll.u32 [#allocation11], 4
      %s2223 = int_to_ptr.vmem [resolvable:$true] %s2222
      %2225 = dma.vmem_to_hbm [thread:$0]  %s2223, 16, %s6, [#allocation5]
    $region45: #{tpu_custom_call.1} parent=1 // pred_fallthru
      _
    // Predicated region
    $region46: #{tpu_custom_call.1} parent=1 // pred_check
      _
    $region47: #{tpu_custom_call.1} parent=1 // pred_check_branch
      %2227 = sbr.rel (0) target = $region49
    $region48: #{tpu_custom_call.1} parent=1 // pred_region
      %2228 = dma.done [#allocation5], 16
    $region49: #{tpu_custom_call.1} parent=1 // pred_fallthru
      _
    %2229 = vsyncpa [#allocation4], 1
    %2230 = vsyncpa [#allocation7], 1
    %2231 = vsyncpa [#allocation10], 1
    %2232 = vsyncpa [#allocation5], 1

</llo_original>
